<compile_context>
chip_gen: v7x
topology: tpu7x:2x2x1
jax: 0.10.0
libtpu: 0.0.40
codegen_flags: <defaults>
</compile_context>

<pallas_src>
import functools
import math

import jax
import jax.numpy as jnp
from jax import lax
from jax.experimental import pallas as pl
from jax.experimental.pallas import tpu as pltpu


def _erf(x):
    # nn.GELU() uses exact erf; Abramowitz & Stegun 7.1.26 polynomial (max abs err
    # ~1.5e-7, i.e. float32-level) built from mul/add/exp plus one exact divide.
    # TODO(synk): evaluate lax.erf (native lowering) or tanh-approx GELU if the VALU
    # becomes the saturating slot at production (S~200, hidden~3072) sizes.
    a1, a2, a3, a4, a5 = (0.254829592, -0.284496736, 1.421413741,
                          -1.453152027, 1.061405429)
    p = 0.3275911
    s = jnp.where(x >= 0.0, 1.0, -1.0)
    z = jnp.abs(x)
    t = pl.reciprocal(1.0 + p * z, approx=False)   # exact divide
    poly = ((((a5 * t + a4) * t + a3) * t + a2) * t + a1) * t
    return s * (1.0 - poly * jnp.exp(-z * z))


def _gelu_exact(x):
    return 0.5 * x * (1.0 + _erf(x * (1.0 / math.sqrt(2.0))))


def _layernorm(x, gamma, beta, eps=1e-5):
    mean = jnp.mean(x, axis=-1, keepdims=True)
    var = jnp.mean(jnp.square(x - mean), axis=-1, keepdims=True)
    return (x - mean) * lax.rsqrt(var + eps) * gamma + beta


def _vit_block_kernel(n_heads, d_head,
                      x_ref, g1_ref, be1_ref, wqkv_ref, bqkv_ref,
                      g2_ref, be2_ref, w1_ref, b1_ref, w2_ref, b2_ref,
                      o_ref):
    f32 = jnp.float32
    bf16 = jnp.bfloat16
    Bt, S, D = x_ref.shape

    x = x_ref[...].reshape(Bt * S, D)                    # (Bt*S, D) f32, rows = tokens
    xn = _layernorm(x, g1_ref[...], be1_ref[...])        # norm1 (f32)
    xn_b = xn.astype(bf16)

    # Fused block-diagonal QKV projection: one lane-dense (Bt*S, D) @ (D, 3D) matmul.
    # The 1/sqrt(d_head) scale is already folded into the Q columns / Q bias.
    qkv = jnp.dot(xn_b, wqkv_ref[...], preferred_element_type=f32) + bqkv_ref[...]
    qkv_b = qkv.astype(bf16).reshape(Bt, S, 3 * D)

    # Per-head attention, batched over the Bt sequences of this block.  Head outputs
    # stay in registers and are merged with one lane-wise concatenate (no masked
    # sub-lane scratch stores).
    # TODO(synk): at production H (>=12) switch to a fully head-batched einsum over a
    # (Bt*H, S, d_head) relayout to bound vreg live ranges across heads.
    head_outs = []
    for h in range(n_heads):                             # static unrolled head loop
        lo = h * d_head
        qh = qkv_b[:, :, lo:lo + d_head]                         # (Bt, S, dh)
        kh = qkv_b[:, :, D + lo:D + lo + d_head]
        vh = qkv_b[:, :, 2 * D + lo:2 * D + lo + d_head]
        s = jnp.einsum('bqd,bkd->bqk', qh, kh,
                       preferred_element_type=f32)               # (Bt, S, S)
        s = s - jnp.max(s, axis=-1, keepdims=True)
        p = jnp.exp(s)
        inv = pl.reciprocal(jnp.sum(p, axis=-1, keepdims=True), approx=True)
        head_outs.append(jnp.einsum('bqk,bkd->bqd', (p * inv).astype(bf16), vh,
                                    preferred_element_type=f32))
    mhsa = jnp.concatenate(head_outs, axis=-1).reshape(Bt * S, D)

    out1 = x + mhsa                                      # first residual (f32)

    xn2 = _layernorm(out1, g2_ref[...], be2_ref[...])    # norm2
    h1 = jnp.dot(xn2.astype(bf16), w1_ref[...],
                 preferred_element_type=f32) + b1_ref[...]
    h1 = _gelu_exact(h1)
    y = jnp.dot(h1.astype(bf16), w2_ref[...],
                preferred_element_type=f32) + b2_ref[...]

    o_ref[...] = (out1 + y).reshape(Bt, S, D).astype(o_ref.dtype)   # second residual


def prepare_vit_block_params(params, n_heads):
    """One-time weight prep: fused block-diagonal QKV, transposes, scale fold, bf16.

    Call once at parameter-load time and reuse for every forward call.
    """
    D = params["g1"].shape[-1]
    dh = D // n_heads
    scale = 1.0 / math.sqrt(dh)

    def block_diag(w):                       # w: (H, dh, dh), torch Linear (out, in)
        bd = jnp.zeros((D, D), jnp.float32)
        for h in range(n_heads):
            bd = bd.at[h * dh:(h + 1) * dh, h * dh:(h + 1) * dh].set(w[h].T)
        return bd

    # TODO(synk): at production D keep true per-head (dh, dh) weights and use a
    # head-batched einsum instead of block-diag (block-diag costs H x the MXU FLOPs
    # and weight VMEM; acceptable only at small D like here).
    wqkv = jnp.concatenate([block_diag(params["wq"]) * scale,
                            block_diag(params["wk"]),
                            block_diag(params["wv"])], axis=1)          # (D, 3D)
    bqkv = jnp.concatenate([params["bq"].reshape(1, D) * scale,
                            params["bk"].reshape(1, D),
                            params["bv"].reshape(1, D)], axis=1)        # (1, 3D)

    return dict(
        g1=params["g1"].reshape(1, D).astype(jnp.float32),
        be1=params["be1"].reshape(1, D).astype(jnp.float32),
        wqkv=wqkv.astype(jnp.bfloat16),
        bqkv=bqkv.astype(jnp.float32),
        g2=params["g2"].reshape(1, D).astype(jnp.float32),
        be2=params["be2"].reshape(1, D).astype(jnp.float32),
        w1=params["w1"].T.astype(jnp.bfloat16),          # (D, 4D)
        b1=params["b1"].reshape(1, -1).astype(jnp.float32),
        w2=params["w2"].T.astype(jnp.bfloat16),          # (4D, D)
        b2=params["b2"].reshape(1, D).astype(jnp.float32),
    )


def vit_block(x, prep, n_heads, block_b=None):
    B, S, D = x.shape
    assert D % n_heads == 0
    d_head = D // n_heads

    if block_b is None:
        # Batch several sequences per grid step (fills the MXU M-dim, amortizes the
        # ~0.35us per-step overhead) while keeping >=2 grid steps so the "parallel"
        # batch axis can shard across v7x's two TensorCores.
        block_b = max(1, B // 2)
    while B % block_b:
        block_b -= 1

    weight_names = ["g1", "be1", "wqkv", "bqkv", "g2", "be2",
                    "w1", "b1", "w2", "b2"]
    weights = [prep[n] for n in weight_names]

    def full_spec(a):
        nd = a.ndim
        # Constant index_map: the tile is DMA'd once and reused across the grid.
        # TODO(synk): at production sizes single-buffer these weight specs
        # (pl.Buffered(1)) or stream w1/w2 via a K/N grid axis so they are not fully
        # resident (matters on v7x's 64 MiB VMEM); at these toy sizes they are KiB.
        return pl.BlockSpec(a.shape, lambda b, nd=nd: (0,) * nd)

    mlp_hidden = prep["w1"].shape[1]
    flops = 2 * B * S * (3 * D * D + 2 * S * D + 2 * D * mlp_hidden)
    transcendentals = B * S * (n_heads * S + mlp_hidden)
    bytes_accessed = (2 * x.size * x.dtype.itemsize
                      + sum(w.size * w.dtype.itemsize for w in weights))

    # TODO(synk): for production ViT sizes (D>=768, S~200) add grid axes tiling S
    # (flash-style online softmax) and the MLP hidden dim so scores and w1/w2 stream
    # through VMEM; on v5e/v6e (128 MiB physical VMEM) raising vmem_limit_bytes and
    # keeping weights resident is the simpler alternative.
    kernel = functools.partial(_vit_block_kernel, n_heads, d_head)
    return pl.pallas_call(
        kernel,
        out_shape=jax.ShapeDtypeStruct((B, S, D), x.dtype),
        grid=(B // block_b,),
        in_specs=[pl.BlockSpec((block_b, S, D), lambda b: (b, 0, 0))]
                 + [full_spec(a) for a in weights],
        out_specs=pl.BlockSpec((block_b, S, D), lambda b: (b, 0, 0)),
        compiler_params=pltpu.CompilerParams(
            dimension_semantics=("parallel",),
            vmem_limit_bytes=32 * 1024 * 1024),
        cost_estimate=pl.CostEstimate(flops=flops,
                                      transcendentals=transcendentals,
                                      bytes_accessed=bytes_accessed),
    )(x, *weights)


def _vit_block_reference(x, params, n_heads):
    """Pure-JAX f32 port of the PyTorch MyViTBlock forward (tolerance check)."""
    D = x.shape[-1]
    dh = D // n_heads

    def ln(v, g, b, eps=1e-5):
        m = jnp.mean(v, axis=-1, keepdims=True)
        var = jnp.mean(jnp.square(v - m), axis=-1, keepdims=True)
        return (v - m) / jnp.sqrt(var + eps) * g.reshape(D) + b.reshape(D)

    xn = ln(x, params["g1"], params["be1"])
    heads = []
    for h in range(n_heads):
        seq = xn[..., h * dh:(h + 1) * dh]
        q = seq @ params["wq"][h].T + params["bq"][h].reshape(dh)
        k = seq @ params["wk"][h].T + params["bk"][h].reshape(dh)
        v = seq @ params["wv"][h].T + params["bv"][h].reshape(dh)
        a = jax.nn.softmax(jnp.einsum("bqd,bkd->bqk", q, k) / math.sqrt(dh), axis=-1)
        heads.append(jnp.einsum("bqk,bkd->bqd", a, v))
    out1 = x + jnp.concatenate(heads, axis=-1)
    xn2 = ln(out1, params["g2"], params["be2"])
    h1 = jax.nn.gelu(xn2 @ params["w1"].T + params["b1"].reshape(-1),
                     approximate=False)
    y = h1 @ params["w2"].T + params["b2"].reshape(-1)
    return out1 + y


if __name__ == "__main__":
    B, S, D, H, MLP_RATIO = 4, 8, 32, 2, 4
    dh = D // H

    key = jax.random.PRNGKey(0)
    keys = jax.random.split(key, 12)

    def init(k, shape, fan_in):
        bound = 1.0 / math.sqrt(fan_in)
        return jax.random.uniform(k, shape, jnp.float32, -bound, bound)

    params = dict(
        g1=jnp.ones((1, D), jnp.float32),       # LayerNorm defaults: weight=1, bias=0
        be1=jnp.zeros((1, D), jnp.float32),
        wq=init(keys[0], (H, dh, dh), dh),      # per-head torch Linear (out, in)
        bq=init(keys[1], (H, 1, dh), dh),
        wk=init(keys[2], (H, dh, dh), dh),
        bk=init(keys[3], (H, 1, dh), dh),
        wv=init(keys[4], (H, dh, dh), dh),
        bv=init(keys[5], (H, 1, dh), dh),
        g2=jnp.ones((1, D), jnp.float32),
        be2=jnp.zeros((1, D), jnp.float32),
        w1=init(keys[6], (MLP_RATIO * D, D), D),
        b1=init(keys[7], (1, MLP_RATIO * D), D),
        w2=init(keys[8], (D, MLP_RATIO * D), MLP_RATIO * D),
        b2=init(keys[9], (1, D), MLP_RATIO * D),
    )
    x = jax.random.normal(keys[10], (B, S, D), jnp.float32)

    prep = jax.tree_util.tree_map(jax.block_until_ready,
                                  prepare_vit_block_params(params, H))
    out = vit_block(x, prep, n_heads=H)
    jax.block_until_ready(out)

    ref = _vit_block_reference(x, params, H)
    max_err = float(jnp.max(jnp.abs(out - ref)))

    assert out.shape == (B, S, D) and out.dtype == jnp.float32
    assert bool(jnp.all(jnp.isfinite(out)))
    # bf16 MXU operands + approx softmax reciprocal => small deviation from f32 ref.
    assert max_err < 0.15, f"max abs err vs f32 reference = {max_err}"
    print("KERNEL_OK")
</pallas_src>

<mosaic_0001>
module attributes {stable_mosaic.version = 11 : i64} {
  func.func @_vit_block_kernel(%arg0: i32, %arg1: memref<2x8x32xf32, #tpu.memory_space<vmem>>, %arg2: memref<1x32xf32, #tpu.memory_space<vmem>>, %arg3: memref<1x32xf32, #tpu.memory_space<vmem>>, %arg4: memref<32x96xbf16, #tpu.memory_space<vmem>>, %arg5: memref<1x96xf32, #tpu.memory_space<vmem>>, %arg6: memref<1x32xf32, #tpu.memory_space<vmem>>, %arg7: memref<1x32xf32, #tpu.memory_space<vmem>>, %arg8: memref<32x128xbf16, #tpu.memory_space<vmem>>, %arg9: memref<1x128xf32, #tpu.memory_space<vmem>>, %arg10: memref<128x32xbf16, #tpu.memory_space<vmem>>, %arg11: memref<1x32xf32, #tpu.memory_space<vmem>>, %arg12: memref<2x8x32xf32, #tpu.memory_space<vmem>>) attributes {dimension_semantics = [#tpu.dimension_semantics<parallel>], iteration_bounds = array<i64: 2>, scalar_prefetch = 0 : i64, scratch_operands = 0 : i64, tpu.core_type = #tpu.core_type<tc>, window_params = [{transform_indices = @transform_0, window_bounds = array<i64: 2, 8, 32>}, {pipeline_mode = #tpu.pipeline_mode<synchronous>, transform_indices = @transform_1, window_bounds = array<i64: 1, 32>}, {pipeline_mode = #tpu.pipeline_mode<synchronous>, transform_indices = @transform_2, window_bounds = array<i64: 1, 32>}, {pipeline_mode = #tpu.pipeline_mode<synchronous>, transform_indices = @transform_3, window_bounds = array<i64: 32, 96>}, {pipeline_mode = #tpu.pipeline_mode<synchronous>, transform_indices = @transform_4, window_bounds = array<i64: 1, 96>}, {pipeline_mode = #tpu.pipeline_mode<synchronous>, transform_indices = @transform_5, window_bounds = array<i64: 1, 32>}, {pipeline_mode = #tpu.pipeline_mode<synchronous>, transform_indices = @transform_6, window_bounds = array<i64: 1, 32>}, {pipeline_mode = #tpu.pipeline_mode<synchronous>, transform_indices = @transform_7, window_bounds = array<i64: 32, 128>}, {pipeline_mode = #tpu.pipeline_mode<synchronous>, transform_indices = @transform_8, window_bounds = array<i64: 1, 128>}, {pipeline_mode = #tpu.pipeline_mode<synchronous>, transform_indices = @transform_9, window_bounds = array<i64: 128, 32>}, {pipeline_mode = #tpu.pipeline_mode<synchronous>, transform_indices = @transform_10, window_bounds = array<i64: 1, 32>}, {transform_indices = @transform_11, window_bounds = array<i64: 2, 8, 32>}]} {
    %c0 = arith.constant 0 : index
    %c0_0 = arith.constant 0 : index
    %c0_1 = arith.constant 0 : index
    %0 = vector.load %arg1[%c0, %c0_0, %c0_1] : memref<2x8x32xf32, #tpu.memory_space<vmem>>, vector<2x8x32xf32>
    %1 = vector.shape_cast %0 : vector<2x8x32xf32> to vector<16x32xf32>
    %c0_2 = arith.constant 0 : index
    %c0_3 = arith.constant 0 : index
    %2 = vector.load %arg2[%c0_2, %c0_3] : memref<1x32xf32, #tpu.memory_space<vmem>>, vector<1x32xf32>
    %c0_4 = arith.constant 0 : index
    %c0_5 = arith.constant 0 : index
    %3 = vector.load %arg3[%c0_4, %c0_5] : memref<1x32xf32, #tpu.memory_space<vmem>>, vector<1x32xf32>
    %cst = arith.constant dense<0.000000e+00> : vector<16xf32>
    %4 = vector.multi_reduction <add>, %1, %cst [1] : vector<16x32xf32> to vector<16xf32>
    %5 = vector.shape_cast %4 : vector<16xf32> to vector<16x1xf32>
    %cst_6 = arith.constant 3.200000e+01 : f32
    %6 = vector.broadcast %cst_6 : f32 to vector<16x1xf32>
    %7 = arith.divf %5, %6 : vector<16x1xf32>
    %8 = vector.broadcast %7 : vector<16x1xf32> to vector<16x32xf32>
    %9 = arith.subf %1, %8 : vector<16x32xf32>
    %10 = arith.mulf %9, %9 : vector<16x32xf32>
    %cst_7 = arith.constant dense<0.000000e+00> : vector<16xf32>
    %11 = vector.multi_reduction <add>, %10, %cst_7 [1] : vector<16x32xf32> to vector<16xf32>
    %12 = vector.shape_cast %11 : vector<16xf32> to vector<16x1xf32>
    %cst_8 = arith.constant 3.200000e+01 : f32
    %13 = vector.broadcast %cst_8 : f32 to vector<16x1xf32>
    %14 = arith.divf %12, %13 : vector<16x1xf32>
    %15 = vector.broadcast %7 : vector<16x1xf32> to vector<16x32xf32>
    %16 = arith.subf %1, %15 : vector<16x32xf32>
    %cst_9 = arith.constant 9.99999974E-6 : f32
    %17 = vector.broadcast %cst_9 : f32 to vector<16x1xf32>
    %18 = arith.addf %14, %17 : vector<16x1xf32>
    %19 = math.rsqrt %18 : vector<16x1xf32>
    %20 = vector.broadcast %19 : vector<16x1xf32> to vector<16x32xf32>
    %21 = arith.mulf %16, %20 : vector<16x32xf32>
    %22 = vector.broadcast %2 : vector<1x32xf32> to vector<16x32xf32>
    %23 = arith.mulf %21, %22 : vector<16x32xf32>
    %24 = vector.broadcast %3 : vector<1x32xf32> to vector<16x32xf32>
    %25 = arith.addf %23, %24 : vector<16x32xf32>
    %26 = arith.truncf %25 : vector<16x32xf32> to vector<16x32xbf16>
    %c0_10 = arith.constant 0 : index
    %c0_11 = arith.constant 0 : index
    %27 = vector.load %arg4[%c0_10, %c0_11] : memref<32x96xbf16, #tpu.memory_space<vmem>>, vector<32x96xbf16>
    %cst_12 = arith.constant dense<0.000000e+00> : vector<16x96xf32>
    %28 = tpu.matmul %26, %27, %cst_12 {dimension_numbers = #tpu.dot_dimension_numbers<[1], [0], [0], [1], [0, 0, 1, 1], [], []>} : vector<16x32xbf16>, vector<32x96xbf16>, vector<16x96xf32> -> vector<16x96xf32>
    %c0_13 = arith.constant 0 : index
    %c0_14 = arith.constant 0 : index
    %29 = vector.load %arg5[%c0_13, %c0_14] : memref<1x96xf32, #tpu.memory_space<vmem>>, vector<1x96xf32>
    %30 = vector.broadcast %29 : vector<1x96xf32> to vector<16x96xf32>
    %31 = arith.addf %28, %30 : vector<16x96xf32>
    %32 = arith.truncf %31 : vector<16x96xf32> to vector<16x96xbf16>
    %33 = vector.shape_cast %32 : vector<16x96xbf16> to vector<2x8x96xbf16>
    %34 = vector.extract_strided_slice %33 {offsets = [0, 0, 0], sizes = [2, 8, 16], strides = [1, 1, 1]} : vector<2x8x96xbf16> to vector<2x8x16xbf16>
    %35 = vector.extract_strided_slice %33 {offsets = [0, 0, 32], sizes = [2, 8, 16], strides = [1, 1, 1]} : vector<2x8x96xbf16> to vector<2x8x16xbf16>
    %36 = vector.extract_strided_slice %33 {offsets = [0, 0, 64], sizes = [2, 8, 16], strides = [1, 1, 1]} : vector<2x8x96xbf16> to vector<2x8x16xbf16>
    "tpu.trace_start"() <{level = 10 : i32, message = "bqd,bkd->bqk"}> : () -> ()
    %cst_15 = arith.constant dense<0.000000e+00> : vector<2x8x8xf32>
    %37 = tpu.matmul %34, %35, %cst_15 {dimension_numbers = #tpu.dot_dimension_numbers<[2], [2], [1], [1], [0, 0, 0, 1, 1, 1], [0], [0]>} : vector<2x8x16xbf16>, vector<2x8x16xbf16>, vector<2x8x8xf32> -> vector<2x8x8xf32>
    "tpu.trace_stop"() : () -> ()
    %cst_16 = arith.constant dense<0xFF800000> : vector<2x8xf32>
    %38 = vector.multi_reduction <maximumf>, %37, %cst_16 [2] : vector<2x8x8xf32> to vector<2x8xf32>
    %39 = vector.shape_cast %38 : vector<2x8xf32> to vector<2x8x1xf32>
    %40 = vector.broadcast %39 : vector<2x8x1xf32> to vector<2x8x8xf32>
    %41 = arith.subf %37, %40 : vector<2x8x8xf32>
    %42 = math.exp %41 : vector<2x8x8xf32>
    %cst_17 = arith.constant dense<0.000000e+00> : vector<2x8xf32>
    %43 = vector.multi_reduction <add>, %42, %cst_17 [2] : vector<2x8x8xf32> to vector<2x8xf32>
    %44 = vector.shape_cast %43 : vector<2x8xf32> to vector<2x8x1xf32>
    %45 = tpu.reciprocal %44 {approx = true} : vector<2x8x1xf32> -> vector<2x8x1xf32>
    %46 = vector.broadcast %45 : vector<2x8x1xf32> to vector<2x8x8xf32>
    %47 = arith.mulf %42, %46 : vector<2x8x8xf32>
    %48 = arith.truncf %47 : vector<2x8x8xf32> to vector<2x8x8xbf16>
    "tpu.trace_start"() <{level = 10 : i32, message = "bqk,bkd->bqd"}> : () -> ()
    %cst_18 = arith.constant dense<0.000000e+00> : vector<2x8x16xf32>
    %49 = tpu.matmul %48, %36, %cst_18 {dimension_numbers = #tpu.dot_dimension_numbers<[2], [1], [1], [2], [0, 0, 0, 1, 1, 2], [0], [0]>} : vector<2x8x8xbf16>, vector<2x8x16xbf16>, vector<2x8x16xf32> -> vector<2x8x16xf32>
    "tpu.trace_stop"() : () -> ()
    %50 = vector.extract_strided_slice %33 {offsets = [0, 0, 16], sizes = [2, 8, 16], strides = [1, 1, 1]} : vector<2x8x96xbf16> to vector<2x8x16xbf16>
    %51 = vector.extract_strided_slice %33 {offsets = [0, 0, 48], sizes = [2, 8, 16], strides = [1, 1, 1]} : vector<2x8x96xbf16> to vector<2x8x16xbf16>
    %52 = vector.extract_strided_slice %33 {offsets = [0, 0, 80], sizes = [2, 8, 16], strides = [1, 1, 1]} : vector<2x8x96xbf16> to vector<2x8x16xbf16>
    "tpu.trace_start"() <{level = 10 : i32, message = "bqd,bkd->bqk"}> : () -> ()
    %cst_19 = arith.constant dense<0.000000e+00> : vector<2x8x8xf32>
    %53 = tpu.matmul %50, %51, %cst_19 {dimension_numbers = #tpu.dot_dimension_numbers<[2], [2], [1], [1], [0, 0, 0, 1, 1, 1], [0], [0]>} : vector<2x8x16xbf16>, vector<2x8x16xbf16>, vector<2x8x8xf32> -> vector<2x8x8xf32>
    "tpu.trace_stop"() : () -> ()
    %cst_20 = arith.constant dense<0xFF800000> : vector<2x8xf32>
    %54 = vector.multi_reduction <maximumf>, %53, %cst_20 [2] : vector<2x8x8xf32> to vector<2x8xf32>
    %55 = vector.shape_cast %54 : vector<2x8xf32> to vector<2x8x1xf32>
    %56 = vector.broadcast %55 : vector<2x8x1xf32> to vector<2x8x8xf32>
    %57 = arith.subf %53, %56 : vector<2x8x8xf32>
    %58 = math.exp %57 : vector<2x8x8xf32>
    %cst_21 = arith.constant dense<0.000000e+00> : vector<2x8xf32>
    %59 = vector.multi_reduction <add>, %58, %cst_21 [2] : vector<2x8x8xf32> to vector<2x8xf32>
    %60 = vector.shape_cast %59 : vector<2x8xf32> to vector<2x8x1xf32>
    %61 = tpu.reciprocal %60 {approx = true} : vector<2x8x1xf32> -> vector<2x8x1xf32>
    %62 = vector.broadcast %61 : vector<2x8x1xf32> to vector<2x8x8xf32>
    %63 = arith.mulf %58, %62 : vector<2x8x8xf32>
    %64 = arith.truncf %63 : vector<2x8x8xf32> to vector<2x8x8xbf16>
    "tpu.trace_start"() <{level = 10 : i32, message = "bqk,bkd->bqd"}> : () -> ()
    %cst_22 = arith.constant dense<0.000000e+00> : vector<2x8x16xf32>
    %65 = tpu.matmul %64, %52, %cst_22 {dimension_numbers = #tpu.dot_dimension_numbers<[2], [1], [1], [2], [0, 0, 0, 1, 1, 2], [0], [0]>} : vector<2x8x8xbf16>, vector<2x8x16xbf16>, vector<2x8x16xf32> -> vector<2x8x16xf32>
    "tpu.trace_stop"() : () -> ()
    %66 = tpu.concatenate %49, %65 in 2 : vector<2x8x16xf32>, vector<2x8x16xf32> -> vector<2x8x32xf32>
    %67 = vector.shape_cast %66 : vector<2x8x32xf32> to vector<16x32xf32>
    %68 = arith.addf %1, %67 : vector<16x32xf32>
    %c0_23 = arith.constant 0 : index
    %c0_24 = arith.constant 0 : index
    %69 = vector.load %arg6[%c0_23, %c0_24] : memref<1x32xf32, #tpu.memory_space<vmem>>, vector<1x32xf32>
    %c0_25 = arith.constant 0 : index
    %c0_26 = arith.constant 0 : index
    %70 = vector.load %arg7[%c0_25, %c0_26] : memref<1x32xf32, #tpu.memory_space<vmem>>, vector<1x32xf32>
    %cst_27 = arith.constant dense<0.000000e+00> : vector<16xf32>
    %71 = vector.multi_reduction <add>, %68, %cst_27 [1] : vector<16x32xf32> to vector<16xf32>
    %72 = vector.shape_cast %71 : vector<16xf32> to vector<16x1xf32>
    %cst_28 = arith.constant 3.200000e+01 : f32
    %73 = vector.broadcast %cst_28 : f32 to vector<16x1xf32>
    %74 = arith.divf %72, %73 : vector<16x1xf32>
    %75 = vector.broadcast %74 : vector<16x1xf32> to vector<16x32xf32>
    %76 = arith.subf %68, %75 : vector<16x32xf32>
    %77 = arith.mulf %76, %76 : vector<16x32xf32>
    %cst_29 = arith.constant dense<0.000000e+00> : vector<16xf32>
    %78 = vector.multi_reduction <add>, %77, %cst_29 [1] : vector<16x32xf32> to vector<16xf32>
    %79 = vector.shape_cast %78 : vector<16xf32> to vector<16x1xf32>
    %cst_30 = arith.constant 3.200000e+01 : f32
    %80 = vector.broadcast %cst_30 : f32 to vector<16x1xf32>
    %81 = arith.divf %79, %80 : vector<16x1xf32>
    %82 = vector.broadcast %74 : vector<16x1xf32> to vector<16x32xf32>
    %83 = arith.subf %68, %82 : vector<16x32xf32>
    %cst_31 = arith.constant 9.99999974E-6 : f32
    %84 = vector.broadcast %cst_31 : f32 to vector<16x1xf32>
    %85 = arith.addf %81, %84 : vector<16x1xf32>
    %86 = math.rsqrt %85 : vector<16x1xf32>
    %87 = vector.broadcast %86 : vector<16x1xf32> to vector<16x32xf32>
    %88 = arith.mulf %83, %87 : vector<16x32xf32>
    %89 = vector.broadcast %69 : vector<1x32xf32> to vector<16x32xf32>
    %90 = arith.mulf %88, %89 : vector<16x32xf32>
    %91 = vector.broadcast %70 : vector<1x32xf32> to vector<16x32xf32>
    %92 = arith.addf %90, %91 : vector<16x32xf32>
    %93 = arith.truncf %92 : vector<16x32xf32> to vector<16x32xbf16>
    %c0_32 = arith.constant 0 : index
    %c0_33 = arith.constant 0 : index
    %94 = vector.load %arg8[%c0_32, %c0_33] : memref<32x128xbf16, #tpu.memory_space<vmem>>, vector<32x128xbf16>
    %cst_34 = arith.constant dense<0.000000e+00> : vector<16x128xf32>
    %95 = tpu.matmul %93, %94, %cst_34 {dimension_numbers = #tpu.dot_dimension_numbers<[1], [0], [0], [1], [0, 0, 1, 1], [], []>} : vector<16x32xbf16>, vector<32x128xbf16>, vector<16x128xf32> -> vector<16x128xf32>
    %c0_35 = arith.constant 0 : index
    %c0_36 = arith.constant 0 : index
    %96 = vector.load %arg9[%c0_35, %c0_36] : memref<1x128xf32, #tpu.memory_space<vmem>>, vector<1x128xf32>
    %97 = vector.broadcast %96 : vector<1x128xf32> to vector<16x128xf32>
    %98 = arith.addf %95, %97 : vector<16x128xf32>
    %cst_37 = arith.constant 5.000000e-01 : f32
    %99 = vector.broadcast %cst_37 : f32 to vector<16x128xf32>
    %100 = arith.mulf %99, %98 : vector<16x128xf32>
    %cst_38 = arith.constant 0.707106769 : f32
    %101 = vector.broadcast %cst_38 : f32 to vector<16x128xf32>
    %102 = arith.mulf %98, %101 : vector<16x128xf32>
    %cst_39 = arith.constant 0.000000e+00 : f32
    %103 = vector.broadcast %cst_39 : f32 to vector<16x128xf32>
    %104 = arith.cmpf oge, %102, %103 : vector<16x128xf32>
    %cst_40 = arith.constant 1.000000e+00 : f32
    %cst_41 = arith.constant -1.000000e+00 : f32
    %105 = vector.broadcast %cst_40 : f32 to vector<16x128xf32>
    %106 = vector.broadcast %cst_41 : f32 to vector<16x128xf32>
    %107 = arith.select %104, %105, %106 : vector<16x128xi1>, vector<16x128xf32>
    %108 = math.absf %102 : vector<16x128xf32>
    %cst_42 = arith.constant 0.327591091 : f32
    %109 = vector.broadcast %cst_42 : f32 to vector<16x128xf32>
    %110 = arith.mulf %109, %108 : vector<16x128xf32>
    %cst_43 = arith.constant 1.000000e+00 : f32
    %111 = vector.broadcast %cst_43 : f32 to vector<16x128xf32>
    %112 = arith.addf %111, %110 : vector<16x128xf32>
    %113 = tpu.reciprocal %112 : vector<16x128xf32> -> vector<16x128xf32>
    %cst_44 = arith.constant 1.06140542 : f32
    %114 = vector.broadcast %cst_44 : f32 to vector<16x128xf32>
    %115 = arith.mulf %114, %113 : vector<16x128xf32>
    %cst_45 = arith.constant -1.45315206 : f32
    %116 = vector.broadcast %cst_45 : f32 to vector<16x128xf32>
    %117 = arith.addf %115, %116 : vector<16x128xf32>
    %118 = arith.mulf %117, %113 : vector<16x128xf32>
    %cst_46 = arith.constant 1.42141378 : f32
    %119 = vector.broadcast %cst_46 : f32 to vector<16x128xf32>
    %120 = arith.addf %118, %119 : vector<16x128xf32>
    %121 = arith.mulf %120, %113 : vector<16x128xf32>
    %cst_47 = arith.constant -0.284496725 : f32
    %122 = vector.broadcast %cst_47 : f32 to vector<16x128xf32>
    %123 = arith.addf %121, %122 : vector<16x128xf32>
    %124 = arith.mulf %123, %113 : vector<16x128xf32>
    %cst_48 = arith.constant 0.254829586 : f32
    %125 = vector.broadcast %cst_48 : f32 to vector<16x128xf32>
    %126 = arith.addf %124, %125 : vector<16x128xf32>
    %127 = arith.mulf %126, %113 : vector<16x128xf32>
    %cst_49 = arith.constant 0.000000e+00 : f32
    %128 = vector.broadcast %cst_49 : f32 to vector<16x128xf32>
    %129 = arith.subf %128, %108 : vector<16x128xf32>
    %130 = arith.mulf %129, %108 : vector<16x128xf32>
    %131 = math.exp %130 : vector<16x128xf32>
    %132 = arith.mulf %127, %131 : vector<16x128xf32>
    %cst_50 = arith.constant 1.000000e+00 : f32
    %133 = vector.broadcast %cst_50 : f32 to vector<16x128xf32>
    %134 = arith.subf %133, %132 : vector<16x128xf32>
    %135 = arith.mulf %107, %134 : vector<16x128xf32>
    %cst_51 = arith.constant 1.000000e+00 : f32
    %136 = vector.broadcast %cst_51 : f32 to vector<16x128xf32>
    %137 = arith.addf %136, %135 : vector<16x128xf32>
    %138 = arith.mulf %100, %137 : vector<16x128xf32>
    %139 = arith.truncf %138 : vector<16x128xf32> to vector<16x128xbf16>
    %c0_52 = arith.constant 0 : index
    %c0_53 = arith.constant 0 : index
    %140 = vector.load %arg10[%c0_52, %c0_53] : memref<128x32xbf16, #tpu.memory_space<vmem>>, vector<128x32xbf16>
    %cst_54 = arith.constant dense<0.000000e+00> : vector<16x32xf32>
    %141 = tpu.matmul %139, %140, %cst_54 {dimension_numbers = #tpu.dot_dimension_numbers<[1], [0], [0], [1], [0, 0, 1, 1], [], []>} : vector<16x128xbf16>, vector<128x32xbf16>, vector<16x32xf32> -> vector<16x32xf32>
    %c0_55 = arith.constant 0 : index
    %c0_56 = arith.constant 0 : index
    %142 = vector.load %arg11[%c0_55, %c0_56] : memref<1x32xf32, #tpu.memory_space<vmem>>, vector<1x32xf32>
    %143 = vector.broadcast %142 : vector<1x32xf32> to vector<16x32xf32>
    %144 = arith.addf %141, %143 : vector<16x32xf32>
    %145 = arith.addf %68, %144 : vector<16x32xf32>
    %146 = vector.shape_cast %145 : vector<16x32xf32> to vector<2x8x32xf32>
    %c0_57 = arith.constant 0 : index
    %c0_58 = arith.constant 0 : index
    %c0_59 = arith.constant 0 : index
    %147 = vector.load %arg12[%c0_57, %c0_58, %c0_59] : memref<2x8x32xf32, #tpu.memory_space<vmem>>, vector<2x8x32xf32>
    tpu.vector_store %arg12[%c0_57, %c0_58, %c0_59], %146 {strides = array<i32>} : memref<2x8x32xf32, #tpu.memory_space<vmem>>, vector<2x8x32xf32>,
    return
  }
  func.func @transform_0(%arg0: i32) -> (i32, i32, i32) {
    %c0_i32 = arith.constant 0 : i32
    %c0_i32_0 = arith.constant 0 : i32
    %c0_i32_1 = arith.constant 0 : i32
    return %arg0, %c0_i32, %c0_i32_0 : i32, i32, i32
  }
  func.func @transform_1(%arg0: i32) -> (i32, i32) {
    %c0_i32 = arith.constant 0 : i32
    %c0_i32_0 = arith.constant 0 : i32
    %c0_i32_1 = arith.constant 0 : i32
    return %c0_i32, %c0_i32_0 : i32, i32
  }
  func.func @transform_2(%arg0: i32) -> (i32, i32) {
    %c0_i32 = arith.constant 0 : i32
    %c0_i32_0 = arith.constant 0 : i32
    %c0_i32_1 = arith.constant 0 : i32
    return %c0_i32, %c0_i32_0 : i32, i32
  }
  func.func @transform_3(%arg0: i32) -> (i32, i32) {
    %c0_i32 = arith.constant 0 : i32
    %c0_i32_0 = arith.constant 0 : i32
    %c0_i32_1 = arith.constant 0 : i32
    return %c0_i32, %c0_i32_0 : i32, i32
  }
  func.func @transform_4(%arg0: i32) -> (i32, i32) {
    %c0_i32 = arith.constant 0 : i32
    %c0_i32_0 = arith.constant 0 : i32
    %c0_i32_1 = arith.constant 0 : i32
    return %c0_i32, %c0_i32_0 : i32, i32
  }
  func.func @transform_5(%arg0: i32) -> (i32, i32) {
    %c0_i32 = arith.constant 0 : i32
    %c0_i32_0 = arith.constant 0 : i32
    %c0_i32_1 = arith.constant 0 : i32
    return %c0_i32, %c0_i32_0 : i32, i32
  }
  func.func @transform_6(%arg0: i32) -> (i32, i32) {
    %c0_i32 = arith.constant 0 : i32
    %c0_i32_0 = arith.constant 0 : i32
    %c0_i32_1 = arith.constant 0 : i32
    return %c0_i32, %c0_i32_0 : i32, i32
  }
  func.func @transform_7(%arg0: i32) -> (i32, i32) {
    %c0_i32 = arith.constant 0 : i32
    %c0_i32_0 = arith.constant 0 : i32
    %c0_i32_1 = arith.constant 0 : i32
    return %c0_i32, %c0_i32_0 : i32, i32
  }
  func.func @transform_8(%arg0: i32) -> (i32, i32) {
    %c0_i32 = arith.constant 0 : i32
    %c0_i32_0 = arith.constant 0 : i32
    %c0_i32_1 = arith.constant 0 : i32
    return %c0_i32, %c0_i32_0 : i32, i32
  }
  func.func @transform_9(%arg0: i32) -> (i32, i32) {
    %c0_i32 = arith.constant 0 : i32
    %c0_i32_0 = arith.constant 0 : i32
    %c0_i32_1 = arith.constant 0 : i32
    return %c0_i32, %c0_i32_0 : i32, i32
  }
  func.func @transform_10(%arg0: i32) -> (i32, i32) {
    %c0_i32 = arith.constant 0 : i32
    %c0_i32_0 = arith.constant 0 : i32
    %c0_i32_1 = arith.constant 0 : i32
    return %c0_i32, %c0_i32_0 : i32, i32
  }
  func.func @transform_11(%arg0: i32) -> (i32, i32, i32) {
    %c0_i32 = arith.constant 0 : i32
    %c0_i32_0 = arith.constant 0 : i32
    %c0_i32_1 = arith.constant 0 : i32
    return %arg0, %c0_i32, %c0_i32_0 : i32, i32, i32
  }
}

</mosaic_0001>

<llo_original>
// kernel: tpu_custom_call.1
$region0: #{tpu_custom_call.1}
  #allocation0 [shape = 'u32[]', space=smem, size = 0x4, offset = 0x4, fixed_abs, tag = 'smem constant byte address 0x4 - core index']
  #allocation1 [shape = 'u32[144,128]{1,0:T(1,128)}', space=vmem, size = 0x12000, scoped, tag = 'internal scratch']
  %s0 = inlined_call_operand.vmem [shape: f32[4,8,32], index: 0, kind: input, shape index: {}]
  %s1 = inlined_call_operand.vmem [shape: f32[1,32], index: 1, kind: input, shape index: {}]
  %s2 = inlined_call_operand.vmem [shape: f32[1,32], index: 2, kind: input, shape index: {}]
  %s3 = inlined_call_operand.vmem [shape: bf16[32,96], index: 3, kind: input, shape index: {}]
  %s4 = inlined_call_operand.vmem [shape: f32[1,96], index: 4, kind: input, shape index: {}]
  %s5 = inlined_call_operand.vmem [shape: f32[1,32], index: 5, kind: input, shape index: {}]
  %s6 = inlined_call_operand.vmem [shape: f32[1,32], index: 6, kind: input, shape index: {}]
  %s7 = inlined_call_operand.vmem [shape: bf16[32,128], index: 7, kind: input, shape index: {}]
  %s8 = inlined_call_operand.vmem [shape: f32[1,128], index: 8, kind: input, shape index: {}]
  %s9 = inlined_call_operand.vmem [shape: bf16[128,32], index: 9, kind: input, shape index: {}]
  %s10 = inlined_call_operand.vmem [shape: f32[1,32], index: 10, kind: input, shape index: {}]
  %s11 = inlined_call_operand.hbm [shape: f32[4,8,32], index: 11, kind: output, shape index: {}]
  %s12 = sld [smem:[#allocation0]]
  $region77: #{tpu_custom_call.1} parent=0
    _
  %s14 = ssub.s32 1, %s12
  %s15 = scalar_select 0, %s14, %s12
  $region1: #{tpu_custom_call.1} parent=0
    #allocation2 [shape = 'u8[16384]{0}', space=vmem, size = 0x4000, scoped, tag = 'output window, operand 0']
    #allocation3 [shape = 's32[2]{0}', space=sflag, size = 0x8, scoped, tag = 'scoped memory for tpu_custom_call.1']
    %16 = vsyncpa [#allocation3], 0
    %s17 = scalar_lea.sflag [#allocation3], 1
    %18 = vsyncpa %s17, 0
    loop: start=0, step=1, limit=4
    $region2: #{tpu_custom_call.1} parent=1 // loop_pre_header
      _
    $region3: #{tpu_custom_call.1} parent=1 // loop_header
      %s20 = sphi 0, %s24
      %p21 = scmp.ge.s32.totalorder %s20, 4
      %s30 = sphi 0, %s32
      %s33 = sphi 0, %s30
      %s34 = sphi 0, %s33
      %s50 = sphi 0, %s34
      %s54 = sphi 0, %s54
      %s56 = sphi 0, %s54
      %s57 = sphi 0, %s56
      %s71 = sphi 0, %s57
      %s75 = sphi 0, %s75
      %s77 = sphi 0, %s75
      %s78 = sphi 0, %s77
      %s92 = sphi 0, %s78
      %s96 = sphi 0, %s96
      %s98 = sphi 0, %s96
      %s99 = sphi 0, %s98
      %s113 = sphi 0, %s99
      %s117 = sphi 0, %s117
      %s119 = sphi 0, %s117
      %s120 = sphi 0, %s119
      %s134 = sphi 0, %s120
      %s138 = sphi 0, %s138
      %s140 = sphi 0, %s138
      %s141 = sphi 0, %s140
      %s155 = sphi 0, %s141
      %s159 = sphi 0, %s159
      %s161 = sphi 0, %s159
      %s162 = sphi 0, %s161
      %s176 = sphi 0, %s162
      %s180 = sphi 0, %s180
      %s182 = sphi 0, %s180
      %s183 = sphi 0, %s182
      %s197 = sphi 0, %s183
      %s201 = sphi 0, %s201
      %s203 = sphi 0, %s201
      %s204 = sphi 0, %s203
      %s218 = sphi 0, %s204
      %s222 = sphi 0, %s222
      %s224 = sphi 0, %s222
      %s225 = sphi 0, %s224
      %s239 = sphi 0, %s225
      %s243 = sphi 0, %s243
      %s245 = sphi 0, %s243
      %s246 = sphi 0, %s245
      %s260 = sphi 0, %s246
      %s266 = sphi 0, %s268
      %s269 = sphi 0, %s266
      %s270 = sphi 0, %s269
      %s286 = sphi 0, %s270
    $region4: #{tpu_custom_call.1} parent=1 // loop_header_branch
      %23 = sbr.rel (%p21) target = $region8
    $region5: #{tpu_custom_call.1} parent=1 // loop_body
      %s25 = ssub.s32 %s20, 1
      %s26 = ssub.s32 %s20, 2
      %s27 = sadd.s32 %s20, 1
      %s28 = ssub.s32 %s20, %s27
      %p29 = scmp.eq.s32.totalorder %s28, 0
      %s31 = sadd.s32 %s30, 1
      %s32 = scalar_select %p29, %s30, %s31
      %p35 = pneg %p29
      %p36 = scmp.eq.s32.totalorder %s20, 1
      %p37 = por %p35, %p36
      %p38 = scmp.ne.s32.totalorder %s30, %s33
      %p39 = scmp.eq.s32.totalorder %s20, 0
      %p40 = por %p38, %p39
      %p41 = scmp.ne.s32.totalorder %s30, %s33
      %p42 = scmp.eq.s32.totalorder %s25, 1
      %p43 = por %p41, %p42
      %p44 = scmp.ne.s32.totalorder %s33, %s34
      %p45 = scmp.eq.s32.totalorder %s25, 0
      %p46 = por %p44, %p45
      %p47 = scmp.ne.s32.totalorder %s33, %s34
      %p48 = scmp.eq.s32.totalorder %s26, 1
      %p49 = por %p47, %p48
      %p51 = scmp.ne.s32.totalorder %s34, %s50
      %p52 = scmp.eq.s32.totalorder %s26, 0
      %p53 = por %p51, %p52
      %s55 = sadd.s32 %s54, 1
      %p58 = scmp.eq.s32.totalorder %s20, 1
      %p59 = scmp.ne.s32.totalorder %s54, %s56
      %p60 = scmp.eq.s32.totalorder %s20, 0
      %p61 = por %p59, %p60
      %p62 = scmp.ne.s32.totalorder %s54, %s56
      %p63 = scmp.eq.s32.totalorder %s25, 1
      %p64 = por %p62, %p63
      %p65 = scmp.ne.s32.totalorder %s56, %s57
      %p66 = scmp.eq.s32.totalorder %s25, 0
      %p67 = por %p65, %p66
      %p68 = scmp.ne.s32.totalorder %s56, %s57
      %p69 = scmp.eq.s32.totalorder %s26, 1
      %p70 = por %p68, %p69
      %p72 = scmp.ne.s32.totalorder %s57, %s71
      %p73 = scmp.eq.s32.totalorder %s26, 0
      %p74 = por %p72, %p73
      %s76 = sadd.s32 %s75, 1
      %p79 = scmp.eq.s32.totalorder %s20, 1
      %p80 = scmp.ne.s32.totalorder %s75, %s77
      %p81 = scmp.eq.s32.totalorder %s20, 0
      %p82 = por %p80, %p81
      %p83 = scmp.ne.s32.totalorder %s75, %s77
      %p84 = scmp.eq.s32.totalorder %s25, 1
      %p85 = por %p83, %p84
      %p86 = scmp.ne.s32.totalorder %s77, %s78
      %p87 = scmp.eq.s32.totalorder %s25, 0
      %p88 = por %p86, %p87
      %p89 = scmp.ne.s32.totalorder %s77, %s78
      %p90 = scmp.eq.s32.totalorder %s26, 1
      %p91 = por %p89, %p90
      %p93 = scmp.ne.s32.totalorder %s78, %s92
      %p94 = scmp.eq.s32.totalorder %s26, 0
      %p95 = por %p93, %p94
      %s97 = sadd.s32 %s96, 1
      %p100 = scmp.eq.s32.totalorder %s20, 1
      %p101 = scmp.ne.s32.totalorder %s96, %s98
      %p102 = scmp.eq.s32.totalorder %s20, 0
      %p103 = por %p101, %p102
      %p104 = scmp.ne.s32.totalorder %s96, %s98
      %p105 = scmp.eq.s32.totalorder %s25, 1
      %p106 = por %p104, %p105
      %p107 = scmp.ne.s32.totalorder %s98, %s99
      %p108 = scmp.eq.s32.totalorder %s25, 0
      %p109 = por %p107, %p108
      %p110 = scmp.ne.s32.totalorder %s98, %s99
      %p111 = scmp.eq.s32.totalorder %s26, 1
      %p112 = por %p110, %p111
      %p114 = scmp.ne.s32.totalorder %s99, %s113
      %p115 = scmp.eq.s32.totalorder %s26, 0
      %p116 = por %p114, %p115
      %s118 = sadd.s32 %s117, 1
      %p121 = scmp.eq.s32.totalorder %s20, 1
      %p122 = scmp.ne.s32.totalorder %s117, %s119
      %p123 = scmp.eq.s32.totalorder %s20, 0
      %p124 = por %p122, %p123
      %p125 = scmp.ne.s32.totalorder %s117, %s119
      %p126 = scmp.eq.s32.totalorder %s25, 1
      %p127 = por %p125, %p126
      %p128 = scmp.ne.s32.totalorder %s119, %s120
      %p129 = scmp.eq.s32.totalorder %s25, 0
      %p130 = por %p128, %p129
      %p131 = scmp.ne.s32.totalorder %s119, %s120
      %p132 = scmp.eq.s32.totalorder %s26, 1
      %p133 = por %p131, %p132
      %p135 = scmp.ne.s32.totalorder %s120, %s134
      %p136 = scmp.eq.s32.totalorder %s26, 0
      %p137 = por %p135, %p136
      %s139 = sadd.s32 %s138, 1
      %p142 = scmp.eq.s32.totalorder %s20, 1
      %p143 = scmp.ne.s32.totalorder %s138, %s140
      %p144 = scmp.eq.s32.totalorder %s20, 0
      %p145 = por %p143, %p144
      %p146 = scmp.ne.s32.totalorder %s138, %s140
      %p147 = scmp.eq.s32.totalorder %s25, 1
      %p148 = por %p146, %p147
      %p149 = scmp.ne.s32.totalorder %s140, %s141
      %p150 = scmp.eq.s32.totalorder %s25, 0
      %p151 = por %p149, %p150
      %p152 = scmp.ne.s32.totalorder %s140, %s141
      %p153 = scmp.eq.s32.totalorder %s26, 1
      %p154 = por %p152, %p153
      %p156 = scmp.ne.s32.totalorder %s141, %s155
      %p157 = scmp.eq.s32.totalorder %s26, 0
      %p158 = por %p156, %p157
      %s160 = sadd.s32 %s159, 1
      %p163 = scmp.eq.s32.totalorder %s20, 1
      %p164 = scmp.ne.s32.totalorder %s159, %s161
      %p165 = scmp.eq.s32.totalorder %s20, 0
      %p166 = por %p164, %p165
      %p167 = scmp.ne.s32.totalorder %s159, %s161
      %p168 = scmp.eq.s32.totalorder %s25, 1
      %p169 = por %p167, %p168
      %p170 = scmp.ne.s32.totalorder %s161, %s162
      %p171 = scmp.eq.s32.totalorder %s25, 0
      %p172 = por %p170, %p171
      %p173 = scmp.ne.s32.totalorder %s161, %s162
      %p174 = scmp.eq.s32.totalorder %s26, 1
      %p175 = por %p173, %p174
      %p177 = scmp.ne.s32.totalorder %s162, %s176
      %p178 = scmp.eq.s32.totalorder %s26, 0
      %p179 = por %p177, %p178
      %s181 = sadd.s32 %s180, 1
      %p184 = scmp.eq.s32.totalorder %s20, 1
      %p185 = scmp.ne.s32.totalorder %s180, %s182
      %p186 = scmp.eq.s32.totalorder %s20, 0
      %p187 = por %p185, %p186
      %p188 = scmp.ne.s32.totalorder %s180, %s182
      %p189 = scmp.eq.s32.totalorder %s25, 1
      %p190 = por %p188, %p189
      %p191 = scmp.ne.s32.totalorder %s182, %s183
      %p192 = scmp.eq.s32.totalorder %s25, 0
      %p193 = por %p191, %p192
      %p194 = scmp.ne.s32.totalorder %s182, %s183
      %p195 = scmp.eq.s32.totalorder %s26, 1
      %p196 = por %p194, %p195
      %p198 = scmp.ne.s32.totalorder %s183, %s197
      %p199 = scmp.eq.s32.totalorder %s26, 0
      %p200 = por %p198, %p199
      %s202 = sadd.s32 %s201, 1
      %p205 = scmp.eq.s32.totalorder %s20, 1
      %p206 = scmp.ne.s32.totalorder %s201, %s203
      %p207 = scmp.eq.s32.totalorder %s20, 0
      %p208 = por %p206, %p207
      %p209 = scmp.ne.s32.totalorder %s201, %s203
      %p210 = scmp.eq.s32.totalorder %s25, 1
      %p211 = por %p209, %p210
      %p212 = scmp.ne.s32.totalorder %s203, %s204
      %p213 = scmp.eq.s32.totalorder %s25, 0
      %p214 = por %p212, %p213
      %p215 = scmp.ne.s32.totalorder %s203, %s204
      %p216 = scmp.eq.s32.totalorder %s26, 1
      %p217 = por %p215, %p216
      %p219 = scmp.ne.s32.totalorder %s204, %s218
      %p220 = scmp.eq.s32.totalorder %s26, 0
      %p221 = por %p219, %p220
      %s223 = sadd.s32 %s222, 1
      %p226 = scmp.eq.s32.totalorder %s20, 1
      %p227 = scmp.ne.s32.totalorder %s222, %s224
      %p228 = scmp.eq.s32.totalorder %s20, 0
      %p229 = por %p227, %p228
      %p230 = scmp.ne.s32.totalorder %s222, %s224
      %p231 = scmp.eq.s32.totalorder %s25, 1
      %p232 = por %p230, %p231
      %p233 = scmp.ne.s32.totalorder %s224, %s225
      %p234 = scmp.eq.s32.totalorder %s25, 0
      %p235 = por %p233, %p234
      %p236 = scmp.ne.s32.totalorder %s224, %s225
      %p237 = scmp.eq.s32.totalorder %s26, 1
      %p238 = por %p236, %p237
      %p240 = scmp.ne.s32.totalorder %s225, %s239
      %p241 = scmp.eq.s32.totalorder %s26, 0
      %p242 = por %p240, %p241
      %s244 = sadd.s32 %s243, 1
      %p247 = scmp.eq.s32.totalorder %s20, 1
      %p248 = scmp.ne.s32.totalorder %s243, %s245
      %p249 = scmp.eq.s32.totalorder %s20, 0
      %p250 = por %p248, %p249
      %p251 = scmp.ne.s32.totalorder %s243, %s245
      %p252 = scmp.eq.s32.totalorder %s25, 1
      %p253 = por %p251, %p252
      %p254 = scmp.ne.s32.totalorder %s245, %s246
      %p255 = scmp.eq.s32.totalorder %s25, 0
      %p256 = por %p254, %p255
      %p257 = scmp.ne.s32.totalorder %s245, %s246
      %p258 = scmp.eq.s32.totalorder %s26, 1
      %p259 = por %p257, %p258
      %p261 = scmp.ne.s32.totalorder %s246, %s260
      %p262 = scmp.eq.s32.totalorder %s26, 0
      %p263 = por %p261, %p262
      %s264 = ssub.s32 %s20, %s27
      %p265 = scmp.eq.s32.totalorder %s264, 0
      %s267 = sadd.s32 %s266, 1
      %s268 = scalar_select %p265, %s266, %s267
      %p271 = pneg %p265
      %p272 = scmp.eq.s32.totalorder %s20, 1
      %p273 = por %p271, %p272
      %p274 = scmp.ne.s32.totalorder %s266, %s269
      %p275 = scmp.eq.s32.totalorder %s20, 0
      %p276 = por %p274, %p275
      %p277 = scmp.ne.s32.totalorder %s266, %s269
      %p278 = scmp.eq.s32.totalorder %s25, 1
      %p279 = por %p277, %p278
      %p280 = scmp.ne.s32.totalorder %s269, %s270
      %p281 = scmp.eq.s32.totalorder %s25, 0
      %p282 = por %p280, %p281
      %p283 = scmp.ne.s32.totalorder %s269, %s270
      %p284 = scmp.eq.s32.totalorder %s26, 1
      %p285 = por %p283, %p284
      %p287 = scmp.ne.s32.totalorder %s270, %s286
      %p288 = scmp.eq.s32.totalorder %s26, 0
      %p289 = por %p287, %p288
      %p290 = scmp.le.s32.totalorder 1, %s20
      %p291 = scmp.lt.s32.totalorder %s20, 3
      %p292 = pnand %p290, %p291
      %p293 = pneg %p292
      // Predicated region
      $region9: #{tpu_custom_call.1} parent=5 // pred_check
        _
      $region10: #{tpu_custom_call.1} parent=5 // pred_check_branch
        %295 = sbr.rel (%p292) target = $region12
      $region11: #{tpu_custom_call.1} parent=5 // pred_region
        %s296 = ssub.s32 %s20, 1
        // Predicated region
        $region13: #{tpu_custom_call.1} parent=11 // pred_check
          %p297 = pneg %p67
        $region14: #{tpu_custom_call.1} parent=11 // pred_check_branch
          %299 = sbr.rel (%p297) target = $region16
        $region15: #{tpu_custom_call.1} parent=11 // pred_region
          _
        $region16: #{tpu_custom_call.1} parent=11 // pred_fallthru
          _
        // Predicated region
        $region17: #{tpu_custom_call.1} parent=11 // pred_check
          %p300 = pneg %p88
        $region18: #{tpu_custom_call.1} parent=11 // pred_check_branch
          %302 = sbr.rel (%p300) target = $region20
        $region19: #{tpu_custom_call.1} parent=11 // pred_region
          _
        $region20: #{tpu_custom_call.1} parent=11 // pred_fallthru
          _
        // Predicated region
        $region21: #{tpu_custom_call.1} parent=11 // pred_check
          %p303 = pneg %p109
        $region22: #{tpu_custom_call.1} parent=11 // pred_check_branch
          %305 = sbr.rel (%p303) target = $region24
        $region23: #{tpu_custom_call.1} parent=11 // pred_region
          _
        $region24: #{tpu_custom_call.1} parent=11 // pred_fallthru
          _
        // Predicated region
        $region25: #{tpu_custom_call.1} parent=11 // pred_check
          %p306 = pneg %p130
        $region26: #{tpu_custom_call.1} parent=11 // pred_check_branch
          %308 = sbr.rel (%p306) target = $region28
        $region27: #{tpu_custom_call.1} parent=11 // pred_region
          _
        $region28: #{tpu_custom_call.1} parent=11 // pred_fallthru
          _
        // Predicated region
        $region29: #{tpu_custom_call.1} parent=11 // pred_check
          %p309 = pneg %p151
        $region30: #{tpu_custom_call.1} parent=11 // pred_check_branch
          %311 = sbr.rel (%p309) target = $region32
        $region31: #{tpu_custom_call.1} parent=11 // pred_region
          _
        $region32: #{tpu_custom_call.1} parent=11 // pred_fallthru
          _
        // Predicated region
        $region33: #{tpu_custom_call.1} parent=11 // pred_check
          %p312 = pneg %p172
        $region34: #{tpu_custom_call.1} parent=11 // pred_check_branch
          %314 = sbr.rel (%p312) target = $region36
        $region35: #{tpu_custom_call.1} parent=11 // pred_region
          _
        $region36: #{tpu_custom_call.1} parent=11 // pred_fallthru
          _
        // Predicated region
        $region37: #{tpu_custom_call.1} parent=11 // pred_check
          %p315 = pneg %p193
        $region38: #{tpu_custom_call.1} parent=11 // pred_check_branch
          %317 = sbr.rel (%p315) target = $region40
        $region39: #{tpu_custom_call.1} parent=11 // pred_region
          _
        $region40: #{tpu_custom_call.1} parent=11 // pred_fallthru
          _
        // Predicated region
        $region41: #{tpu_custom_call.1} parent=11 // pred_check
          %p318 = pneg %p214
        $region42: #{tpu_custom_call.1} parent=11 // pred_check_branch
          %320 = sbr.rel (%p318) target = $region44
        $region43: #{tpu_custom_call.1} parent=11 // pred_region
          _
        $region44: #{tpu_custom_call.1} parent=11 // pred_fallthru
          _
        // Predicated region
        $region45: #{tpu_custom_call.1} parent=11 // pred_check
          %p321 = pneg %p235
        $region46: #{tpu_custom_call.1} parent=11 // pred_check_branch
          %323 = sbr.rel (%p321) target = $region48
        $region47: #{tpu_custom_call.1} parent=11 // pred_region
          _
        $region48: #{tpu_custom_call.1} parent=11 // pred_fallthru
          _
        // Predicated region
        $region49: #{tpu_custom_call.1} parent=11 // pred_check
          %p324 = pneg %p256
        $region50: #{tpu_custom_call.1} parent=11 // pred_check_branch
          %326 = sbr.rel (%p324) target = $region52
        $region51: #{tpu_custom_call.1} parent=11 // pred_region
          _
        $region52: #{tpu_custom_call.1} parent=11 // pred_fallthru
          _
      $region12: #{tpu_custom_call.1} parent=5 // pred_fallthru
        _
      %p327 = scmp.lt.s32.totalorder %s20, 2
      // Predicated region
      $region53: #{tpu_custom_call.1} parent=5 // pred_check
        %p328 = pneg %p327
      $region54: #{tpu_custom_call.1} parent=5 // pred_check_branch
        %330 = sbr.rel (%p328) target = $region56
      $region55: #{tpu_custom_call.1} parent=5 // pred_region
        // Predicated region
        $region57: #{tpu_custom_call.1} parent=55 // pred_check
          %p331 = pneg %p40
        $region58: #{tpu_custom_call.1} parent=55 // pred_check_branch
          %333 = sbr.rel (%p331) target = $region60
        $region59: #{tpu_custom_call.1} parent=55 // pred_region
          %s334 = smul.u32 2, %s20
          %p335 = scmp.lt.s32.totalorder %s334, 3
          %s336 = scalar_select %p335, %s334, 3
          %s337 = smul.addr %s336, 8
          %s338 = scalar_lea.vmem %s0, %s337
          %s339 = smul.u32 2, %s20
        $region60: #{tpu_custom_call.1} parent=55 // pred_fallthru
          _
      $region56: #{tpu_custom_call.1} parent=5 // pred_fallthru
        _
      %p340 = scmp.le.s32.totalorder 1, %s20
      %p341 = scmp.lt.s32.totalorder %s20, 3
      %p342 = pnand %p340, %p341
      %p343 = pneg %p342
      // Predicated region
      $region61: #{tpu_custom_call.1} parent=5 // pred_check
        _
      $region62: #{tpu_custom_call.1} parent=5 // pred_check_branch
        %345 = sbr.rel (%p342) target = $region64
      $region63: #{tpu_custom_call.1} parent=5 // pred_region
        %s346 = ssub.s32 %s20, 1
        %s347 = smul.u32 2, %s25
        %p348 = scmp.lt.s32.totalorder %s347, 3
        %s349 = scalar_select %p348, %s347, 3
        %s350 = smul.addr %s349, 8
        %s351 = scalar_lea.vmem %s0, %s350
        %p352 = pneg %p46
        %p353 = pneg %p43
        %p354 = pneg %p67
        %p355 = pneg %p64
        %p356 = pneg %p88
        %p357 = pneg %p85
        %p358 = pneg %p109
        %p359 = pneg %p106
        %p360 = pneg %p130
        %p361 = pneg %p127
        %p362 = pneg %p151
        %p363 = pneg %p148
        %p364 = pneg %p172
        %p365 = pneg %p169
        %p366 = pneg %p193
        %p367 = pneg %p190
        %p368 = pneg %p214
        %p369 = pneg %p211
        %p370 = pneg %p235
        %p371 = pneg %p232
        %p372 = pneg %p256
        %p373 = pneg %p253
        %p374 = pneg %p282
        %p375 = pneg %p279
        %s376 = sand.u32 %s269, 1
        %s377 = scalar_lea.sflag [#allocation3], %s376
        %s378 = sand.u32 %s269, 1
        %s379 = smul.addr %s378, 16
        %s380 = scalar_lea.vmem [#allocation2], %s379
        %s381 = smul.u32 2, %s25
        %p382 = scmp.lt.s32.totalorder %s381, 3
        %s383 = scalar_select %p382, %s381, 3
        %s384 = smul.addr %s383, 8
        %s385 = scalar_lea.vmem %s0, %s384
        %s386 = smul.u32 2, %s25
        %s387 = smul.u32 2, %s25
        %v389 = vld [vmem:[%s385] sm:$0xff]
        %v390 = vld [vmem:[%s385 + $0x8] sm:$0xff]
        %v391 = vld [vmem:[%s1] sm:$0x1]
        %v392 = vld [vmem:[%s2] sm:$0x1]
        %vm393 = vcmask 261120
        %v394 = vsel %vm393, %v389, 0.0
        %395 = vadd.xlane.f32.xlu0 %v394
        %v396 = vpop.xlane.xlu0 %395
        %v397 = vsel %vm393, %v390, 0.0
        %398 = vadd.xlane.f32.xlu0 %v397
        %v399 = vpop.xlane.xlu0 %398
        %v400 = vrcp.pop 32.0
        %v401 = vmul.f32 %v396, %v400
        %v402 = vmul.f32 %v399, %v400
        %v403 = vsub.f32 %v389, %v401
        %v404 = vsub.f32 %v390, %v402
        %v405 = vmul.f32 %v403, %v403
        %v406 = vmul.f32 %v404, %v404
        %v407 = vsel %vm393, %v405, 0.0
        %408 = vadd.xlane.f32.xlu0 %v407
        %v409 = vpop.xlane.xlu0 %408
        %v410 = vsel %vm393, %v406, 0.0
        %411 = vadd.xlane.f32.xlu0 %v410
        %v412 = vpop.xlane.xlu0 %411
        %v413 = vmul.f32 %v409, %v400
        %v414 = vmul.f32 %v412, %v400
        %v415 = vadd.f32 %v413, 1e-05
        %v416 = vadd.f32 %v414, 1e-05
        %v417 = vrsqrt.pop %v415
        %v418 = vrsqrt.pop %v416
        %v419 = vmul.f32 %v403, %v417
        %v420 = vmul.f32 %v404, %v418
        %v422 = vlaneseq
        %v423 = vshrl.u32 %v422, 7
        %v424 = vsub.s32 0, %v423
        %v425 = vrot.slane %v391, %v424
        %v427 = vmul.f32 %v419, %v425
        %v428 = vmul.f32 %v420, %v425
        %v430 = vlaneseq
        %v431 = vshrl.u32 %v430, 7
        %v432 = vsub.s32 0, %v431
        %v433 = vrot.slane %v392, %v432
        %v435 = vadd.f32 %v427, %v433
        %v436 = vadd.f32 %v428, %v433
        %v437 = vpack.c.bf16 %v436, %v435
        %v438 = vld [vmem:[%s3] sm:$0xf]
        %v439 = vld [vmem:[%s3 + $0x4] sm:$0xf]
        %v440 = vld [vmem:[%s3 + $0x8] sm:$0xf]
        %v441 = vld [vmem:[%s3 + $0xc] sm:$0xf]
        %v442 = vld [vmem:[%s4] sm:$0x1]
        %v444 = vlaneseq
        %v445 = vshrl.u32 %v444, 7
        %v446 = vsub.s32 0, %v445
        %v447 = vrot.slane %v442, %v446
        %v453 = vunpack.c.l.b16 %v438
        %v454 = vunpack.c.l.b16 %v439
        %v455 = vunpack.c.l.b16 %v440
        %v456 = vunpack.c.l.b16 %v441
        %v457 = vpack.c.b16 %v454, %v453
        %v458 = vpack.c.b16 %v456, %v455
        %v462 = vsel %vm393, %v437, 0
        %464 = vmatprep.subr.bf16.mxu0 0
        %465 = vmatpush1.bf16.msra.mxu0 %v457
        %466 = vmatprep.subr.bf16.mxu0 0
        %467 = vmatpush1.bf16.msra.mxu0 %v458
        %468 = vmatprep.subr.bf16.mxu0 0
        %469 = vmatpush1.bf16.msra.mxu0 0
        %470 = vmatprep.subr.bf16.mxu0 0
        %471 = vmatpush1.bf16.msra.mxu0 0
        %472 = vmatprep.subr.bf16.mxu0 0
        %473 = vmatpush1.bf16.msra.mxu0 0
        %474 = vmatprep.subr.bf16.mxu0 0
        %475 = vmatpush1.bf16.msra.mxu0 0
        %476 = vmatprep.subr.bf16.mxu0 0
        %477 = vmatpush1.bf16.msra.mxu0 0
        %478 = vmatprep.subr.bf16.mxu0 0
        %479 = vmatpush1.bf16.msra.mxu0 0
        %480 = vmatprep.subr.bf16.mxu0 0
        %481 = vmatpush1.bf16.msra.mxu0 0
        %482 = vmatprep.subr.bf16.mxu0 0
        %483 = vmatpush1.bf16.msra.mxu0 0
        %484 = vmatprep.subr.bf16.mxu0 0
        %485 = vmatpush1.bf16.msra.mxu0 0
        %486 = vmatprep.subr.bf16.mxu0 0
        %487 = vmatpush1.bf16.msra.mxu0 0
        %488 = vmatprep.subr.bf16.mxu0 0
        %489 = vmatpush1.bf16.msra.mxu0 0
        %490 = vmatprep.subr.bf16.mxu0 0
        %491 = vmatpush1.bf16.msra.mxu0 0
        %492 = vmatprep.subr.bf16.mxu0 0
        %493 = vmatpush1.bf16.msra.mxu0 0
        %494 = vmatprep.subr.bf16.mxu0 0
        %495 = vmatpush1.bf16.msra.mxu0 0
        %496 = vmatprep.mubr.bf16.mxu0 0
        %497 = vmatmul.mubr.bf16.gmra.mrb[0].mxu0 %v462
        %v498 = vpop.f32.mrb[0].mxu0
        %v499 = vadd.f32 %v447, %v498
        %v500 = vpop.f32.mrb[0].mxu0
        %v501 = vpop.f32.mrb[0].mxu0
        %v502 = vadd.f32 %v447, %v501
        %v503 = vpop.f32.mrb[0].mxu0
        %504 = vdwg.mxu0
        %v505 = vpack.c.bf16 %v502, %v499
        %v507 = vunpack.c.l.b16 %v505
        %v508 = vunpack.c.h.b16 %v505
        %v509 = vpack.c.b16 %v507, %v507
        %v510 = vpack.c.b16 %v508, %v508
        %511 = vrot.lane.b32.xlu0 %v509, 96
        %v512 = vpop.permute.xlu0 %511
        %vm513 = vcmask 130048
        %v515 = vsel %vm513, %v509, 0
        %v518 = vsel %vm513, %v512, 0
        %520 = vmatprep.subr.bf16.mxu0 0
        %521 = vmatpush1.bf16.xpose.msra.mxu0 %v518
        %522 = vmatprep.subr.bf16.mxu0 0
        %523 = vmatpush1.bf16.xpose.msra.mxu0 0
        %524 = vmatprep.subr.bf16.mxu0 0
        %525 = vmatpush1.bf16.xpose.msra.mxu0 0
        %526 = vmatprep.subr.bf16.mxu0 0
        %527 = vmatpush1.bf16.xpose.msra.mxu0 0
        %528 = vmatprep.subr.bf16.mxu0 0
        %529 = vmatpush1.bf16.xpose.msra.mxu0 0
        %530 = vmatprep.subr.bf16.mxu0 0
        %531 = vmatpush1.bf16.xpose.msra.mxu0 0
        %532 = vmatprep.subr.bf16.mxu0 0
        %533 = vmatpush1.bf16.xpose.msra.mxu0 0
        %534 = vmatprep.subr.bf16.mxu0 0
        %535 = vmatpush1.bf16.xpose.msra.mxu0 0
        %536 = vmatprep.subr.bf16.mxu0 0
        %537 = vmatpush1.bf16.xpose.msra.mxu0 0
        %538 = vmatprep.subr.bf16.mxu0 0
        %539 = vmatpush1.bf16.xpose.msra.mxu0 0
        %540 = vmatprep.subr.bf16.mxu0 0
        %541 = vmatpush1.bf16.xpose.msra.mxu0 0
        %542 = vmatprep.subr.bf16.mxu0 0
        %543 = vmatpush1.bf16.xpose.msra.mxu0 0
        %544 = vmatprep.subr.bf16.mxu0 0
        %545 = vmatpush1.bf16.xpose.msra.mxu0 0
        %546 = vmatprep.subr.bf16.mxu0 0
        %547 = vmatpush1.bf16.xpose.msra.mxu0 0
        %548 = vmatprep.subr.bf16.mxu0 0
        %549 = vmatpush1.bf16.xpose.msra.mxu0 0
        %550 = vmatprep.subr.bf16.mxu0 0
        %551 = vmatpush1.bf16.xpose.msra.mxu0 0
        %552 = vmatprep.mubr.bf16.mxu0 0
        %553 = vmatmul.mubr.bf16.gmra.mrb[0].mxu0 %v515
        %v554 = vpop.f32.mrb[0].mxu0
        %v555 = vadd.f32 0.0, %v554
        %v556 = vpop.f32.mrb[0].mxu0
        %v557 = vpop.f32.mrb[0].mxu0
        %v558 = vpop.f32.mrb[0].mxu0
        %559 = vdwg.mxu0
        %560 = vrot.lane.b32.xlu0 %v510, 96
        %v561 = vpop.permute.xlu0 %560
        %v563 = vsel %vm513, %v510, 0
        %v566 = vsel %vm513, %v561, 0
        %568 = vmatprep.subr.bf16.mxu0 0
        %569 = vmatpush1.bf16.xpose.msra.mxu0 %v566
        %570 = vmatprep.subr.bf16.mxu0 0
        %571 = vmatpush1.bf16.xpose.msra.mxu0 0
        %572 = vmatprep.subr.bf16.mxu0 0
        %573 = vmatpush1.bf16.xpose.msra.mxu0 0
        %574 = vmatprep.subr.bf16.mxu0 0
        %575 = vmatpush1.bf16.xpose.msra.mxu0 0
        %576 = vmatprep.subr.bf16.mxu0 0
        %577 = vmatpush1.bf16.xpose.msra.mxu0 0
        %578 = vmatprep.subr.bf16.mxu0 0
        %579 = vmatpush1.bf16.xpose.msra.mxu0 0
        %580 = vmatprep.subr.bf16.mxu0 0
        %581 = vmatpush1.bf16.xpose.msra.mxu0 0
        %582 = vmatprep.subr.bf16.mxu0 0
        %583 = vmatpush1.bf16.xpose.msra.mxu0 0
        %584 = vmatprep.subr.bf16.mxu0 0
        %585 = vmatpush1.bf16.xpose.msra.mxu0 0
        %586 = vmatprep.subr.bf16.mxu0 0
        %587 = vmatpush1.bf16.xpose.msra.mxu0 0
        %588 = vmatprep.subr.bf16.mxu0 0
        %589 = vmatpush1.bf16.xpose.msra.mxu0 0
        %590 = vmatprep.subr.bf16.mxu0 0
        %591 = vmatpush1.bf16.xpose.msra.mxu0 0
        %592 = vmatprep.subr.bf16.mxu0 0
        %593 = vmatpush1.bf16.xpose.msra.mxu0 0
        %594 = vmatprep.subr.bf16.mxu0 0
        %595 = vmatpush1.bf16.xpose.msra.mxu0 0
        %596 = vmatprep.subr.bf16.mxu0 0
        %597 = vmatpush1.bf16.xpose.msra.mxu0 0
        %598 = vmatprep.subr.bf16.mxu0 0
        %599 = vmatpush1.bf16.xpose.msra.mxu0 0
        %600 = vmatprep.mubr.bf16.mxu0 0
        %601 = vmatmul.mubr.bf16.gmra.mrb[0].mxu0 %v563
        %v602 = vpop.f32.mrb[0].mxu0
        %v603 = vadd.f32 0.0, %v602
        %v604 = vpop.f32.mrb[0].mxu0
        %v605 = vpop.f32.mrb[0].mxu0
        %v606 = vpop.f32.mrb[0].mxu0
        %607 = vdwg.mxu0
        %vm608 = vcmask 64512
        %v609 = vsel %vm608, %v555, -inf
        %610 = vmax.xlane.f32.xlu0 %v609
        %v611 = vpop.xlane.xlu0 %610
        %v612 = vsel %vm608, %v603, -inf
        %613 = vmax.xlane.f32.xlu0 %v612
        %v614 = vpop.xlane.xlu0 %613
        %v615 = vsub.f32 %v555, %v611
        %v616 = vsub.f32 %v603, %v614
        %v617 = vmul.f32 %v615, 1.442695
        %v618 = vpow.pop %v617
        %v619 = vmul.f32 %v616, 1.442695
        %v620 = vpow.pop %v619
        %v621 = vsel %vm608, %v618, 0.0
        %622 = vadd.xlane.f32.xlu0 %v621
        %v623 = vpop.xlane.xlu0 %622
        %v624 = vsel %vm608, %v620, 0.0
        %625 = vadd.xlane.f32.xlu0 %v624
        %v626 = vpop.xlane.xlu0 %625
        %v627 = vrcp.pop %v623
        %v628 = vrcp.pop %v626
        %v629 = vmul.f32 %v618, %v627
        %v630 = vmul.f32 %v620, %v628
        %v631 = vpack.c.bf16 %v629, %v629
        %v632 = vpack.c.bf16 %v630, %v630
        %633 = vrot.lane.b32.xlu0 %v509, 64
        %v634 = vpop.permute.xlu0 %633
        %v636 = vsel %vm608, %v631, 0
        %vm638 = vcmask 1043456
        %v640 = vsel %vm638, %v634, 0
        %642 = vmatprep.subr.bf16.mxu0 0
        %643 = vmatpush1.bf16.msra.mxu0 %v640
        %644 = vmatprep.subr.bf16.mxu0 0
        %645 = vmatpush1.bf16.msra.mxu0 0
        %646 = vmatprep.subr.bf16.mxu0 0
        %647 = vmatpush1.bf16.msra.mxu0 0
        %648 = vmatprep.subr.bf16.mxu0 0
        %649 = vmatpush1.bf16.msra.mxu0 0
        %650 = vmatprep.subr.bf16.mxu0 0
        %651 = vmatpush1.bf16.msra.mxu0 0
        %652 = vmatprep.subr.bf16.mxu0 0
        %653 = vmatpush1.bf16.msra.mxu0 0
        %654 = vmatprep.subr.bf16.mxu0 0
        %655 = vmatpush1.bf16.msra.mxu0 0
        %656 = vmatprep.subr.bf16.mxu0 0
        %657 = vmatpush1.bf16.msra.mxu0 0
        %658 = vmatprep.subr.bf16.mxu0 0
        %659 = vmatpush1.bf16.msra.mxu0 0
        %660 = vmatprep.subr.bf16.mxu0 0
        %661 = vmatpush1.bf16.msra.mxu0 0
        %662 = vmatprep.subr.bf16.mxu0 0
        %663 = vmatpush1.bf16.msra.mxu0 0
        %664 = vmatprep.subr.bf16.mxu0 0
        %665 = vmatpush1.bf16.msra.mxu0 0
        %666 = vmatprep.subr.bf16.mxu0 0
        %667 = vmatpush1.bf16.msra.mxu0 0
        %668 = vmatprep.subr.bf16.mxu0 0
        %669 = vmatpush1.bf16.msra.mxu0 0
        %670 = vmatprep.subr.bf16.mxu0 0
        %671 = vmatpush1.bf16.msra.mxu0 0
        %672 = vmatprep.subr.bf16.mxu0 0
        %673 = vmatpush1.bf16.msra.mxu0 0
        %674 = vmatprep.mubr.bf16.mxu0 0
        %675 = vmatmul.mubr.bf16.gmra.mrb[0].mxu0 %v636
        %v676 = vpop.f32.mrb[0].mxu0
        %v677 = vadd.f32 0.0, %v676
        %v678 = vpop.f32.mrb[0].mxu0
        %v679 = vpop.f32.mrb[0].mxu0
        %v680 = vpop.f32.mrb[0].mxu0
        %681 = vdwg.mxu0
        %682 = vrot.lane.b32.xlu0 %v510, 64
        %v683 = vpop.permute.xlu0 %682
        %v685 = vsel %vm608, %v632, 0
        %v688 = vsel %vm638, %v683, 0
        %690 = vmatprep.subr.bf16.mxu0 0
        %691 = vmatpush1.bf16.msra.mxu0 %v688
        %692 = vmatprep.subr.bf16.mxu0 0
        %693 = vmatpush1.bf16.msra.mxu0 0
        %694 = vmatprep.subr.bf16.mxu0 0
        %695 = vmatpush1.bf16.msra.mxu0 0
        %696 = vmatprep.subr.bf16.mxu0 0
        %697 = vmatpush1.bf16.msra.mxu0 0
        %698 = vmatprep.subr.bf16.mxu0 0
        %699 = vmatpush1.bf16.msra.mxu0 0
        %700 = vmatprep.subr.bf16.mxu0 0
        %701 = vmatpush1.bf16.msra.mxu0 0
        %702 = vmatprep.subr.bf16.mxu0 0
        %703 = vmatpush1.bf16.msra.mxu0 0
        %704 = vmatprep.subr.bf16.mxu0 0
        %705 = vmatpush1.bf16.msra.mxu0 0
        %706 = vmatprep.subr.bf16.mxu0 0
        %707 = vmatpush1.bf16.msra.mxu0 0
        %708 = vmatprep.subr.bf16.mxu0 0
        %709 = vmatpush1.bf16.msra.mxu0 0
        %710 = vmatprep.subr.bf16.mxu0 0
        %711 = vmatpush1.bf16.msra.mxu0 0
        %712 = vmatprep.subr.bf16.mxu0 0
        %713 = vmatpush1.bf16.msra.mxu0 0
        %714 = vmatprep.subr.bf16.mxu0 0
        %715 = vmatpush1.bf16.msra.mxu0 0
        %716 = vmatprep.subr.bf16.mxu0 0
        %717 = vmatpush1.bf16.msra.mxu0 0
        %718 = vmatprep.subr.bf16.mxu0 0
        %719 = vmatpush1.bf16.msra.mxu0 0
        %720 = vmatprep.subr.bf16.mxu0 0
        %721 = vmatpush1.bf16.msra.mxu0 0
        %722 = vmatprep.mubr.bf16.mxu0 0
        %723 = vmatmul.mubr.bf16.gmra.mrb[0].mxu0 %v685
        %v724 = vpop.f32.mrb[0].mxu0
        %v725 = vadd.f32 0.0, %v724
        %v726 = vpop.f32.mrb[0].mxu0
        %v727 = vpop.f32.mrb[0].mxu0
        %v728 = vpop.f32.mrb[0].mxu0
        %729 = vdwg.mxu0
        %730 = vrot.lane.b32.xlu0 %v509, 112
        %v731 = vpop.permute.xlu0 %730
        %732 = vrot.lane.b32.xlu0 %v509, 80
        %v733 = vpop.permute.xlu0 %732
        %v735 = vsel %vm513, %v731, 0
        %v738 = vsel %vm513, %v733, 0
        %740 = vmatprep.subr.bf16.mxu0 0
        %741 = vmatpush1.bf16.xpose.msra.mxu0 %v738
        %742 = vmatprep.subr.bf16.mxu0 0
        %743 = vmatpush1.bf16.xpose.msra.mxu0 0
        %744 = vmatprep.subr.bf16.mxu0 0
        %745 = vmatpush1.bf16.xpose.msra.mxu0 0
        %746 = vmatprep.subr.bf16.mxu0 0
        %747 = vmatpush1.bf16.xpose.msra.mxu0 0
        %748 = vmatprep.subr.bf16.mxu0 0
        %749 = vmatpush1.bf16.xpose.msra.mxu0 0
        %750 = vmatprep.subr.bf16.mxu0 0
        %751 = vmatpush1.bf16.xpose.msra.mxu0 0
        %752 = vmatprep.subr.bf16.mxu0 0
        %753 = vmatpush1.bf16.xpose.msra.mxu0 0
        %754 = vmatprep.subr.bf16.mxu0 0
        %755 = vmatpush1.bf16.xpose.msra.mxu0 0
        %756 = vmatprep.subr.bf16.mxu0 0
        %757 = vmatpush1.bf16.xpose.msra.mxu0 0
        %758 = vmatprep.subr.bf16.mxu0 0
        %759 = vmatpush1.bf16.xpose.msra.mxu0 0
        %760 = vmatprep.subr.bf16.mxu0 0
        %761 = vmatpush1.bf16.xpose.msra.mxu0 0
        %762 = vmatprep.subr.bf16.mxu0 0
        %763 = vmatpush1.bf16.xpose.msra.mxu0 0
        %764 = vmatprep.subr.bf16.mxu0 0
        %765 = vmatpush1.bf16.xpose.msra.mxu0 0
        %766 = vmatprep.subr.bf16.mxu0 0
        %767 = vmatpush1.bf16.xpose.msra.mxu0 0
        %768 = vmatprep.subr.bf16.mxu0 0
        %769 = vmatpush1.bf16.xpose.msra.mxu0 0
        %770 = vmatprep.subr.bf16.mxu0 0
        %771 = vmatpush1.bf16.xpose.msra.mxu0 0
        %772 = vmatprep.mubr.bf16.mxu0 0
        %773 = vmatmul.mubr.bf16.gmra.mrb[0].mxu0 %v735
        %v774 = vpop.f32.mrb[0].mxu0
        %v775 = vadd.f32 0.0, %v774
        %v776 = vpop.f32.mrb[0].mxu0
        %v777 = vpop.f32.mrb[0].mxu0
        %v778 = vpop.f32.mrb[0].mxu0
        %779 = vdwg.mxu0
        %780 = vrot.lane.b32.xlu0 %v510, 112
        %v781 = vpop.permute.xlu0 %780
        %782 = vrot.lane.b32.xlu0 %v510, 80
        %v783 = vpop.permute.xlu0 %782
        %v785 = vsel %vm513, %v781, 0
        %v788 = vsel %vm513, %v783, 0
        %790 = vmatprep.subr.bf16.mxu0 0
        %791 = vmatpush1.bf16.xpose.msra.mxu0 %v788
        %792 = vmatprep.subr.bf16.mxu0 0
        %793 = vmatpush1.bf16.xpose.msra.mxu0 0
        %794 = vmatprep.subr.bf16.mxu0 0
        %795 = vmatpush1.bf16.xpose.msra.mxu0 0
        %796 = vmatprep.subr.bf16.mxu0 0
        %797 = vmatpush1.bf16.xpose.msra.mxu0 0
        %798 = vmatprep.subr.bf16.mxu0 0
        %799 = vmatpush1.bf16.xpose.msra.mxu0 0
        %800 = vmatprep.subr.bf16.mxu0 0
        %801 = vmatpush1.bf16.xpose.msra.mxu0 0
        %802 = vmatprep.subr.bf16.mxu0 0
        %803 = vmatpush1.bf16.xpose.msra.mxu0 0
        %804 = vmatprep.subr.bf16.mxu0 0
        %805 = vmatpush1.bf16.xpose.msra.mxu0 0
        %806 = vmatprep.subr.bf16.mxu0 0
        %807 = vmatpush1.bf16.xpose.msra.mxu0 0
        %808 = vmatprep.subr.bf16.mxu0 0
        %809 = vmatpush1.bf16.xpose.msra.mxu0 0
        %810 = vmatprep.subr.bf16.mxu0 0
        %811 = vmatpush1.bf16.xpose.msra.mxu0 0
        %812 = vmatprep.subr.bf16.mxu0 0
        %813 = vmatpush1.bf16.xpose.msra.mxu0 0
        %814 = vmatprep.subr.bf16.mxu0 0
        %815 = vmatpush1.bf16.xpose.msra.mxu0 0
        %816 = vmatprep.subr.bf16.mxu0 0
        %817 = vmatpush1.bf16.xpose.msra.mxu0 0
        %818 = vmatprep.subr.bf16.mxu0 0
        %819 = vmatpush1.bf16.xpose.msra.mxu0 0
        %820 = vmatprep.subr.bf16.mxu0 0
        %821 = vmatpush1.bf16.xpose.msra.mxu0 0
        %822 = vmatprep.mubr.bf16.mxu0 0
        %823 = vmatmul.mubr.bf16.gmra.mrb[0].mxu0 %v785
        %v824 = vpop.f32.mrb[0].mxu0
        %v825 = vadd.f32 0.0, %v824
        %v826 = vpop.f32.mrb[0].mxu0
        %v827 = vpop.f32.mrb[0].mxu0
        %v828 = vpop.f32.mrb[0].mxu0
        %829 = vdwg.mxu0
        %v830 = vsel %vm608, %v775, -inf
        %831 = vmax.xlane.f32.xlu0 %v830
        %v832 = vpop.xlane.xlu0 %831
        %v833 = vsel %vm608, %v825, -inf
        %834 = vmax.xlane.f32.xlu0 %v833
        %v835 = vpop.xlane.xlu0 %834
        %v836 = vsub.f32 %v775, %v832
        %v837 = vsub.f32 %v825, %v835
        %v838 = vmul.f32 %v836, 1.442695
        %v839 = vpow.pop %v838
        %v840 = vmul.f32 %v837, 1.442695
        %v841 = vpow.pop %v840
        %v842 = vsel %vm608, %v839, 0.0
        %843 = vadd.xlane.f32.xlu0 %v842
        %v844 = vpop.xlane.xlu0 %843
        %v845 = vsel %vm608, %v841, 0.0
        %846 = vadd.xlane.f32.xlu0 %v845
        %v847 = vpop.xlane.xlu0 %846
        %v848 = vrcp.pop %v844
        %v849 = vrcp.pop %v847
        %v850 = vmul.f32 %v839, %v848
        %v851 = vmul.f32 %v841, %v849
        %v852 = vpack.c.bf16 %v850, %v850
        %v853 = vpack.c.bf16 %v851, %v851
        %854 = vrot.lane.b32.xlu0 %v509, 48
        %v855 = vpop.permute.xlu0 %854
        %v857 = vsel %vm608, %v852, 0
        %v860 = vsel %vm638, %v855, 0
        %862 = vmatprep.subr.bf16.mxu0 0
        %863 = vmatpush1.bf16.msra.mxu0 %v860
        %864 = vmatprep.subr.bf16.mxu0 0
        %865 = vmatpush1.bf16.msra.mxu0 0
        %866 = vmatprep.subr.bf16.mxu0 0
        %867 = vmatpush1.bf16.msra.mxu0 0
        %868 = vmatprep.subr.bf16.mxu0 0
        %869 = vmatpush1.bf16.msra.mxu0 0
        %870 = vmatprep.subr.bf16.mxu0 0
        %871 = vmatpush1.bf16.msra.mxu0 0
        %872 = vmatprep.subr.bf16.mxu0 0
        %873 = vmatpush1.bf16.msra.mxu0 0
        %874 = vmatprep.subr.bf16.mxu0 0
        %875 = vmatpush1.bf16.msra.mxu0 0
        %876 = vmatprep.subr.bf16.mxu0 0
        %877 = vmatpush1.bf16.msra.mxu0 0
        %878 = vmatprep.subr.bf16.mxu0 0
        %879 = vmatpush1.bf16.msra.mxu0 0
        %880 = vmatprep.subr.bf16.mxu0 0
        %881 = vmatpush1.bf16.msra.mxu0 0
        %882 = vmatprep.subr.bf16.mxu0 0
        %883 = vmatpush1.bf16.msra.mxu0 0
        %884 = vmatprep.subr.bf16.mxu0 0
        %885 = vmatpush1.bf16.msra.mxu0 0
        %886 = vmatprep.subr.bf16.mxu0 0
        %887 = vmatpush1.bf16.msra.mxu0 0
        %888 = vmatprep.subr.bf16.mxu0 0
        %889 = vmatpush1.bf16.msra.mxu0 0
        %890 = vmatprep.subr.bf16.mxu0 0
        %891 = vmatpush1.bf16.msra.mxu0 0
        %892 = vmatprep.subr.bf16.mxu0 0
        %893 = vmatpush1.bf16.msra.mxu0 0
        %894 = vmatprep.mubr.bf16.mxu0 0
        %895 = vmatmul.mubr.bf16.gmra.mrb[0].mxu0 %v857
        %v896 = vpop.f32.mrb[0].mxu0
        %v897 = vadd.f32 0.0, %v896
        %v898 = vpop.f32.mrb[0].mxu0
        %v899 = vpop.f32.mrb[0].mxu0
        %v900 = vpop.f32.mrb[0].mxu0
        %901 = vdwg.mxu0
        %902 = vrot.lane.b32.xlu0 %v510, 48
        %v903 = vpop.permute.xlu0 %902
        %v905 = vsel %vm608, %v853, 0
        %v908 = vsel %vm638, %v903, 0
        %910 = vmatprep.subr.bf16.mxu0 0
        %911 = vmatpush1.bf16.msra.mxu0 %v908
        %912 = vmatprep.subr.bf16.mxu0 0
        %913 = vmatpush1.bf16.msra.mxu0 0
        %914 = vmatprep.subr.bf16.mxu0 0
        %915 = vmatpush1.bf16.msra.mxu0 0
        %916 = vmatprep.subr.bf16.mxu0 0
        %917 = vmatpush1.bf16.msra.mxu0 0
        %918 = vmatprep.subr.bf16.mxu0 0
        %919 = vmatpush1.bf16.msra.mxu0 0
        %920 = vmatprep.subr.bf16.mxu0 0
        %921 = vmatpush1.bf16.msra.mxu0 0
        %922 = vmatprep.subr.bf16.mxu0 0
        %923 = vmatpush1.bf16.msra.mxu0 0
        %924 = vmatprep.subr.bf16.mxu0 0
        %925 = vmatpush1.bf16.msra.mxu0 0
        %926 = vmatprep.subr.bf16.mxu0 0
        %927 = vmatpush1.bf16.msra.mxu0 0
        %928 = vmatprep.subr.bf16.mxu0 0
        %929 = vmatpush1.bf16.msra.mxu0 0
        %930 = vmatprep.subr.bf16.mxu0 0
        %931 = vmatpush1.bf16.msra.mxu0 0
        %932 = vmatprep.subr.bf16.mxu0 0
        %933 = vmatpush1.bf16.msra.mxu0 0
        %934 = vmatprep.subr.bf16.mxu0 0
        %935 = vmatpush1.bf16.msra.mxu0 0
        %936 = vmatprep.subr.bf16.mxu0 0
        %937 = vmatpush1.bf16.msra.mxu0 0
        %938 = vmatprep.subr.bf16.mxu0 0
        %939 = vmatpush1.bf16.msra.mxu0 0
        %940 = vmatprep.subr.bf16.mxu0 0
        %941 = vmatpush1.bf16.msra.mxu0 0
        %942 = vmatprep.mubr.bf16.mxu0 0
        %943 = vmatmul.mubr.bf16.gmra.mrb[0].mxu0 %v905
        %v944 = vpop.f32.mrb[0].mxu0
        %v945 = vadd.f32 0.0, %v944
        %v946 = vpop.f32.mrb[0].mxu0
        %v947 = vpop.f32.mrb[0].mxu0
        %v948 = vpop.f32.mrb[0].mxu0
        %949 = vdwg.mxu0
        %952 = vrot.lane.b32.xlu0 %v897, 16
        %v953 = vpop.permute.xlu0 %952
        %954 = vrot.lane.b32.xlu0 %v945, 16
        %v955 = vpop.permute.xlu0 %954
        %v958 = vsel %vm513, %v677, %v953
        %v959 = vsel %vm513, %v725, %v955
        %v960 = vadd.f32 %v389, %v958
        %v961 = vadd.f32 %v390, %v959
        %v962 = vld [vmem:[%s5] sm:$0x1]
        %v963 = vld [vmem:[%s6] sm:$0x1]
        %v964 = vsel %vm393, %v960, 0.0
        %965 = vadd.xlane.f32.xlu0 %v964
        %v966 = vpop.xlane.xlu0 %965
        %v967 = vsel %vm393, %v961, 0.0
        %968 = vadd.xlane.f32.xlu0 %v967
        %v969 = vpop.xlane.xlu0 %968
        %v970 = vmul.f32 %v966, %v400
        %v971 = vmul.f32 %v969, %v400
        %v972 = vsub.f32 %v960, %v970
        %v973 = vsub.f32 %v961, %v971
        %v974 = vmul.f32 %v972, %v972
        %v975 = vmul.f32 %v973, %v973
        %v976 = vsel %vm393, %v974, 0.0
        %977 = vadd.xlane.f32.xlu0 %v976
        %v978 = vpop.xlane.xlu0 %977
        %v979 = vsel %vm393, %v975, 0.0
        %980 = vadd.xlane.f32.xlu0 %v979
        %v981 = vpop.xlane.xlu0 %980
        %v982 = vmul.f32 %v978, %v400
        %v983 = vmul.f32 %v981, %v400
        %v984 = vadd.f32 %v982, 1e-05
        %v985 = vadd.f32 %v983, 1e-05
        %v986 = vrsqrt.pop %v984
        %v987 = vrsqrt.pop %v985
        %v988 = vmul.f32 %v972, %v986
        %v989 = vmul.f32 %v973, %v987
        %v991 = vlaneseq
        %v992 = vshrl.u32 %v991, 7
        %v993 = vsub.s32 0, %v992
        %v994 = vrot.slane %v962, %v993
        %v996 = vmul.f32 %v988, %v994
        %v997 = vmul.f32 %v989, %v994
        %v999 = vlaneseq
        %v1000 = vshrl.u32 %v999, 7
        %v1001 = vsub.s32 0, %v1000
        %v1002 = vrot.slane %v963, %v1001
        %v1004 = vadd.f32 %v996, %v1002
        %v1005 = vadd.f32 %v997, %v1002
        %v1006 = vpack.c.bf16 %v1005, %v1004
        %v1007 = vld [vmem:[%s7] sm:$0xf]
        %v1008 = vld [vmem:[%s7 + $0x4] sm:$0xf]
        %v1009 = vld [vmem:[%s7 + $0x8] sm:$0xf]
        %v1010 = vld [vmem:[%s7 + $0xc] sm:$0xf]
        %v1011 = vld [vmem:[%s8] sm:$0x1]
        %v1013 = vlaneseq
        %v1014 = vshrl.u32 %v1013, 7
        %v1015 = vsub.s32 0, %v1014
        %v1016 = vrot.slane %v1011, %v1015
        %v1022 = vunpack.c.l.b16 %v1007
        %v1023 = vunpack.c.l.b16 %v1008
        %v1024 = vunpack.c.l.b16 %v1009
        %v1025 = vunpack.c.l.b16 %v1010
        %v1026 = vpack.c.b16 %v1023, %v1022
        %v1027 = vpack.c.b16 %v1025, %v1024
        %v1031 = vsel %vm393, %v1006, 0
        %1033 = vmatprep.subr.bf16.mxu0 0
        %1034 = vmatpush1.bf16.msra.mxu0 %v1026
        %1035 = vmatprep.subr.bf16.mxu0 0
        %1036 = vmatpush1.bf16.msra.mxu0 %v1027
        %1037 = vmatprep.subr.bf16.mxu0 0
        %1038 = vmatpush1.bf16.msra.mxu0 0
        %1039 = vmatprep.subr.bf16.mxu0 0
        %1040 = vmatpush1.bf16.msra.mxu0 0
        %1041 = vmatprep.subr.bf16.mxu0 0
        %1042 = vmatpush1.bf16.msra.mxu0 0
        %1043 = vmatprep.subr.bf16.mxu0 0
        %1044 = vmatpush1.bf16.msra.mxu0 0
        %1045 = vmatprep.subr.bf16.mxu0 0
        %1046 = vmatpush1.bf16.msra.mxu0 0
        %1047 = vmatprep.subr.bf16.mxu0 0
        %1048 = vmatpush1.bf16.msra.mxu0 0
        %1049 = vmatprep.subr.bf16.mxu0 0
        %1050 = vmatpush1.bf16.msra.mxu0 0
        %1051 = vmatprep.subr.bf16.mxu0 0
        %1052 = vmatpush1.bf16.msra.mxu0 0
        %1053 = vmatprep.subr.bf16.mxu0 0
        %1054 = vmatpush1.bf16.msra.mxu0 0
        %1055 = vmatprep.subr.bf16.mxu0 0
        %1056 = vmatpush1.bf16.msra.mxu0 0
        %1057 = vmatprep.subr.bf16.mxu0 0
        %1058 = vmatpush1.bf16.msra.mxu0 0
        %1059 = vmatprep.subr.bf16.mxu0 0
        %1060 = vmatpush1.bf16.msra.mxu0 0
        %1061 = vmatprep.subr.bf16.mxu0 0
        %1062 = vmatpush1.bf16.msra.mxu0 0
        %1063 = vmatprep.subr.bf16.mxu0 0
        %1064 = vmatpush1.bf16.msra.mxu0 0
        %1065 = vmatprep.mubr.bf16.mxu0 0
        %1066 = vmatmul.mubr.bf16.gmra.mrb[0].mxu0 %v1031
        %v1067 = vpop.f32.mrb[0].mxu0
        %v1068 = vadd.f32 %v1016, %v1067
        %v1069 = vpop.f32.mrb[0].mxu0
        %v1070 = vpop.f32.mrb[0].mxu0
        %v1071 = vadd.f32 %v1016, %v1070
        %v1072 = vpop.f32.mrb[0].mxu0
        %1073 = vdwg.mxu0
        %v1074 = vmul.f32 %v1068, 0.5
        %v1075 = vmul.f32 %v1071, 0.5
        %v1076 = vmul.f32 %v1068, 0.70710677
        %v1077 = vmul.f32 %v1071, 0.70710677
        %vm1078 = vcmp.ge.f32.partialorder %v1076, 0.0
        %vm1079 = vcmp.ge.f32.partialorder %v1077, 0.0
        %v1080 = vsel %vm1078, 1.0, -1.0
        %v1081 = vsel %vm1079, 1.0, -1.0
        %v1082 = vand.u32 2147483647, %v1076
        %v1083 = vand.u32 2147483647, %v1077
        %v1084 = vmul.f32 %v1082, 0.3275911
        %v1085 = vmul.f32 %v1083, 0.3275911
        %v1086 = vadd.f32 %v1084, 1.0
        %v1087 = vadd.f32 %v1085, 1.0
        %v1088 = vrcp.pop %v1086
        %v1089 = vrcp.pop %v1087
        %v1090 = vmul.f32 %v1088, 1.0614054
        %v1091 = vmul.f32 %v1089, 1.0614054
        %v1092 = vadd.f32 %v1090, -1.4531521
        %v1093 = vadd.f32 %v1091, -1.4531521
        %v1094 = vmul.f32 %v1092, %v1088
        %v1095 = vmul.f32 %v1093, %v1089
        %v1096 = vadd.f32 %v1094, 1.4214138
        %v1097 = vadd.f32 %v1095, 1.4214138
        %v1098 = vmul.f32 %v1096, %v1088
        %v1099 = vmul.f32 %v1097, %v1089
        %v1100 = vadd.f32 %v1098, -0.28449672
        %v1101 = vadd.f32 %v1099, -0.28449672
        %v1102 = vmul.f32 %v1100, %v1088
        %v1103 = vmul.f32 %v1101, %v1089
        %v1104 = vadd.f32 %v1102, 0.2548296
        %v1105 = vadd.f32 %v1103, 0.2548296
        %v1106 = vmul.f32 %v1104, %v1088
        %v1107 = vmul.f32 %v1105, %v1089
        %v1108 = vsub.f32 0.0, %v1082
        %v1109 = vsub.f32 0.0, %v1083
        %v1110 = vmul.f32 %v1108, %v1082
        %v1111 = vmul.f32 %v1109, %v1083
        %v1112 = vmul.f32 %v1110, 1.442695
        %v1113 = vpow.pop %v1112
        %v1114 = vmul.f32 %v1111, 1.442695
        %v1115 = vpow.pop %v1114
        %v1116 = vmul.f32 %v1106, %v1113
        %v1117 = vmul.f32 %v1107, %v1115
        %v1118 = vsub.f32 1.0, %v1116
        %v1119 = vsub.f32 1.0, %v1117
        %v1120 = vmul.f32 %v1080, %v1118
        %v1121 = vmul.f32 %v1081, %v1119
        %v1122 = vadd.f32 %v1120, 1.0
        %v1123 = vadd.f32 %v1121, 1.0
        %v1124 = vmul.f32 %v1074, %v1122
        %v1125 = vmul.f32 %v1075, %v1123
        %v1126 = vpack.c.bf16 %v1125, %v1124
        %v1127 = vld [vmem:[%s9] sm:$0xf]
        %v1128 = vld [vmem:[%s9 + $0x4] sm:$0xf]
        %v1129 = vld [vmem:[%s9 + $0x8] sm:$0xf]
        %v1130 = vld [vmem:[%s9 + $0xc] sm:$0xf]
        %v1131 = vld [vmem:[%s9 + $0x10] sm:$0xf]
        %v1132 = vld [vmem:[%s9 + $0x14] sm:$0xf]
        %v1133 = vld [vmem:[%s9 + $0x18] sm:$0xf]
        %v1134 = vld [vmem:[%s9 + $0x1c] sm:$0xf]
        %v1135 = vld [vmem:[%s9 + $0x20] sm:$0xf]
        %v1136 = vld [vmem:[%s9 + $0x24] sm:$0xf]
        %v1137 = vld [vmem:[%s9 + $0x28] sm:$0xf]
        %v1138 = vld [vmem:[%s9 + $0x2c] sm:$0xf]
        %v1139 = vld [vmem:[%s9 + $0x30] sm:$0xf]
        %v1140 = vld [vmem:[%s9 + $0x34] sm:$0xf]
        %v1141 = vld [vmem:[%s9 + $0x38] sm:$0xf]
        %v1142 = vld [vmem:[%s9 + $0x3c] sm:$0xf]
        %v1143 = vld [vmem:[%s10] sm:$0x1]
        %v1145 = vlaneseq
        %v1146 = vshrl.u32 %v1145, 7
        %v1147 = vsub.s32 0, %v1146
        %v1148 = vrot.slane %v1143, %v1147
        %v1166 = vunpack.c.l.b16 %v1127
        %v1167 = vunpack.c.l.b16 %v1128
        %v1168 = vunpack.c.l.b16 %v1129
        %v1169 = vunpack.c.l.b16 %v1130
        %v1170 = vunpack.c.l.b16 %v1131
        %v1171 = vunpack.c.l.b16 %v1132
        %v1172 = vunpack.c.l.b16 %v1133
        %v1173 = vunpack.c.l.b16 %v1134
        %v1174 = vunpack.c.l.b16 %v1135
        %v1175 = vunpack.c.l.b16 %v1136
        %v1176 = vunpack.c.l.b16 %v1137
        %v1177 = vunpack.c.l.b16 %v1138
        %v1178 = vunpack.c.l.b16 %v1139
        %v1179 = vunpack.c.l.b16 %v1140
        %v1180 = vunpack.c.l.b16 %v1141
        %v1181 = vunpack.c.l.b16 %v1142
        %v1182 = vpack.c.b16 %v1167, %v1166
        %v1183 = vpack.c.b16 %v1169, %v1168
        %v1184 = vpack.c.b16 %v1171, %v1170
        %v1185 = vpack.c.b16 %v1173, %v1172
        %v1186 = vpack.c.b16 %v1175, %v1174
        %v1187 = vpack.c.b16 %v1177, %v1176
        %v1188 = vpack.c.b16 %v1179, %v1178
        %v1189 = vpack.c.b16 %v1181, %v1180
        %1198 = vmatprep.subr.bf16.mxu0 0
        %1199 = vmatpush1.bf16.msra.mxu0 %v1182
        %1200 = vmatprep.subr.bf16.mxu0 0
        %1201 = vmatpush1.bf16.msra.mxu0 %v1183
        %1202 = vmatprep.subr.bf16.mxu0 0
        %1203 = vmatpush1.bf16.msra.mxu0 %v1184
        %1204 = vmatprep.subr.bf16.mxu0 0
        %1205 = vmatpush1.bf16.msra.mxu0 %v1185
        %1206 = vmatprep.subr.bf16.mxu0 0
        %1207 = vmatpush1.bf16.msra.mxu0 %v1186
        %1208 = vmatprep.subr.bf16.mxu0 0
        %1209 = vmatpush1.bf16.msra.mxu0 %v1187
        %1210 = vmatprep.subr.bf16.mxu0 0
        %1211 = vmatpush1.bf16.msra.mxu0 %v1188
        %1212 = vmatprep.subr.bf16.mxu0 0
        %1213 = vmatpush1.bf16.msra.mxu0 %v1189
        %1214 = vmatprep.subr.bf16.mxu0 0
        %1215 = vmatpush1.bf16.msra.mxu0 0
        %1216 = vmatprep.subr.bf16.mxu0 0
        %1217 = vmatpush1.bf16.msra.mxu0 0
        %1218 = vmatprep.subr.bf16.mxu0 0
        %1219 = vmatpush1.bf16.msra.mxu0 0
        %1220 = vmatprep.subr.bf16.mxu0 0
        %1221 = vmatpush1.bf16.msra.mxu0 0
        %1222 = vmatprep.subr.bf16.mxu0 0
        %1223 = vmatpush1.bf16.msra.mxu0 0
        %1224 = vmatprep.subr.bf16.mxu0 0
        %1225 = vmatpush1.bf16.msra.mxu0 0
        %1226 = vmatprep.subr.bf16.mxu0 0
        %1227 = vmatpush1.bf16.msra.mxu0 0
        %1228 = vmatprep.subr.bf16.mxu0 0
        %1229 = vmatpush1.bf16.msra.mxu0 0
        %1230 = vmatprep.mubr.bf16.mxu0 0
        %1231 = vmatmul.mubr.bf16.gmra.mrb[0].mxu0 %v1126
        %v1232 = vpop.f32.mrb[0].mxu0
        %v1233 = vadd.f32 %v1148, %v1232
        %v1234 = vpop.f32.mrb[0].mxu0
        %v1235 = vpop.f32.mrb[0].mxu0
        %v1236 = vadd.f32 %v1148, %v1235
        %v1237 = vpop.f32.mrb[0].mxu0
        %1238 = vdwg.mxu0
        %v1239 = vadd.f32 %v960, %v1233
        %v1240 = vadd.f32 %v961, %v1236
        %1241 = vst.msk [vmem:[%s380] sm:$0xff] %vm393, %v1239
        %1242 = vst.msk [vmem:[%s380 + $0x8] sm:$0xff] %vm393, %v1240
        %s1243 = sand.u32 %s269, 1
        %s1244 = scalar_lea.sflag [#allocation3], %s1243
        %s1245 = sand.u32 %s269, 1
        %s1246 = smul.addr %s1245, 16
        %s1247 = scalar_lea.vmem [#allocation2], %s1246
        // Predicated region
        $region65: #{tpu_custom_call.1} parent=63 // pred_check
          %p1248 = pneg %p279
        $region66: #{tpu_custom_call.1} parent=63 // pred_check_branch
          %1250 = sbr.rel (%p1248) target = $region68
        $region67: #{tpu_custom_call.1} parent=63 // pred_region
          %s1251 = smul.u32 2, %s25
          %s1253 = ssub.s32 256, 256
          %1254 = vsyncadd %s1244, %s1253
          %s1255 = smul.addr %s1251, 128
          %s1256 = scalar_lea.hbm %s11, %s1255
          %s1257 = sshll.u32 %s1247, 4
          %s1258 = int_to_ptr.vmem [resolvable:$true] %s1257
          %1263 = dma.vmem_to_hbm [thread:$0]  %s1258, 256, %s1256, %s1244, 128, 128, 8
        $region68: #{tpu_custom_call.1} parent=63 // pred_fallthru
          _
      $region64: #{tpu_custom_call.1} parent=5 // pred_fallthru
        _
      %p1264 = scmp.le.s32.totalorder 2, %s20
      // Predicated region
      $region69: #{tpu_custom_call.1} parent=5 // pred_check
        %p1265 = pneg %p1264
      $region70: #{tpu_custom_call.1} parent=5 // pred_check_branch
        %1267 = sbr.rel (%p1265) target = $region72
      $region71: #{tpu_custom_call.1} parent=5 // pred_region
        %s1268 = ssub.s32 %s20, 2
        // Predicated region
        $region73: #{tpu_custom_call.1} parent=71 // pred_check
          %p1269 = pneg %p285
        $region74: #{tpu_custom_call.1} parent=71 // pred_check_branch
          %1271 = sbr.rel (%p1269) target = $region76
        $region75: #{tpu_custom_call.1} parent=71 // pred_region
          %s1272 = sand.u32 %s270, 1
          %s1273 = scalar_lea.sflag [#allocation3], %s1272
          %s1274 = sand.u32 %s270, 1
          %s1275 = smul.addr %s1274, 16
          %s1276 = scalar_lea.vmem [#allocation2], %s1275
          %1277 = dma.done %s1273, 256
        $region76: #{tpu_custom_call.1} parent=71 // pred_fallthru
          _
      $region72: #{tpu_custom_call.1} parent=5 // pred_fallthru
        _
    $region6: #{tpu_custom_call.1} parent=1 // loop_footer
      %s24 = sadd.s32 1, %s20
    $region7: #{tpu_custom_call.1} parent=1 // loop_footer_branch
      %19 = sbr.rel target = $region3
    $region8: #{tpu_custom_call.1} parent=1 // loop_exit
      _
    %1278 = vsyncpa [#allocation3], 1
    %s1279 = scalar_lea.sflag [#allocation3], 1
    %1280 = vsyncpa %s1279, 1

</llo_original>
